<compile_context>
chip_gen: v7x
topology: tpu7x:2x2x1
jax: 0.10.0
libtpu: 0.0.40
codegen_flags: <defaults>
</compile_context>

<pallas_src>
import functools
import math

import jax
import jax.numpy as jnp
from jax.experimental import pallas as pl
from jax.experimental.pallas import tpu as pltpu


def _round_up(a, b):
    return ((a + b - 1) // b) * b


def _bilinear_pool_kernel(ts_ref, cy_ref, cx_ref, data_ref, offy_ref, offx_ref,
                          out_ref, wy_ref, wx_ref, *, h, w, max_shift):
    # data_ref/offy_ref/offx_ref/out_ref: (row_block, HWpad) VMEM, lane-dense.
    # cy_ref/cx_ref: (8, HWpad) int32 VMEM (base y/x per lane, pre-broadcast).
    # ts_ref: (1, 1) f32 SMEM.  wy_ref/wx_ref: (2R+1, 8, HWpad) f32 VMEM scratch.
    rows, hw_pad = data_ref.shape
    shifts = list(range(-max_shift, max_shift + 1))

    ts = ts_ref[0, 0]
    y_p = cy_ref[...]                                  # (8, HWpad) int32
    x_p = cx_ref[...]

    # Process the block in 8-row (one sublane group) chunks so live vregs stay
    # ~constant regardless of block size: data(2) + 2 accs(4) + weights(4) + tmp.
    for r0 in range(0, rows, 8):
        sl = pl.ds(r0, 8)
        data = data_ref[sl, :].astype(jnp.float32)      # (8, HWpad)
        dy = ts * offy_ref[sl, :].astype(jnp.float32)   # fractional y displacement
        dx = ts * offx_ref[sl, :].astype(jnp.float32)
        fy = jnp.floor(dy)
        fx = jnp.floor(dx)
        ly = dy - fy                                    # bilinear fractions
        lx = dx - fx
        hy = 1.0 - ly
        hx = 1.0 - lx
        fy_i = fy.astype(jnp.int32)                     # integer shift of low corner
        fx_i = fx.astype(jnp.int32)

        # Per-axis weights -> VMEM scratch (one-time per chunk; the tap loop
        # re-reads them through the vld slots).  Weight of source line
        # (base + s): (1 - frac) if s is the low corner, frac if the high
        # corner, 0 otherwise; zeroed when base + s leaves [0, extent)
        # (zero padding, matching the reference semantics).
        for si, s in enumerate(shifts):
            wyv = (jnp.where(fy_i == s, hy, 0.0) +
                   jnp.where(fy_i == s - 1, ly, 0.0))
            ys_src = y_p + s
            wy_ref[si] = jnp.where((ys_src >= 0) & (ys_src < h), wyv, 0.0)

            wxv = (jnp.where(fx_i == s, hx, 0.0) +
                   jnp.where(fx_i == s - 1, lx, 0.0))
            xs_src = x_p + s
            wx_ref[si] = jnp.where((xs_src >= 0) & (xs_src < w), wxv, 0.0)

        # Tap loop: two accumulators to break the serial add dependency.
        acc0 = jnp.zeros_like(data)
        acc1 = jnp.zeros_like(data)
        tap = 0
        for iy, sy in enumerate(shifts):
            wyv = wy_ref[iy]                            # (8, HWpad)
            for ix, sx in enumerate(shifts):
                wgt = wyv * wx_ref[ix]                  # full-width, no broadcast
                s_flat = sy * w + sx
                # rolled[p] = data[(p + s_flat) mod HWpad]; valid taps never
                # wrap (boundary masks already folded into wy/wx kill the rest).
                if s_flat == 0:
                    rolled = data
                else:
                    rolled = pltpu.roll(data, shift=(-s_flat) % hw_pad, axis=1)
                if tap % 2 == 0:
                    acc0 = acc0 + wgt * rolled
                else:
                    acc1 = acc1 + wgt * rolled
                tap += 1
        out_ref[sl, :] = (acc0 + acc1).astype(out_ref.dtype)


def bilinear_pooling(data, offset, trans_std, *, max_shift):
    """Pallas forward of BilinearPooling.

    data:   (N, C, H, W);  offset: (N, 2, H, W) (channel 0 = y-, 1 = x-offset).
    max_shift: STATIC stencil radius in pixels; must satisfy
        max_shift >= clamp(trans_std, 0.001, 0.01) * max|offset|.
      Pass a fixed, config-derived value (avoids data-dependent recompiles).
    """
    n, c, h, w = data.shape
    hw = h * w
    hw_pad = _round_up(hw, 128)                         # lane-dense stores
    ts = jnp.clip(jnp.asarray(trans_std, jnp.float32), 0.001, 0.01)

    # Safety check when inputs are concrete (skipped silently under jit).
    try:
        need = int(math.ceil(float(ts) * float(jnp.max(jnp.abs(offset)))))
    except Exception:
        need = None  # traced: caller is responsible for a sufficient max_shift
    if need is not None and need > max_shift:
        raise ValueError(f"max_shift={max_shift} too small; need >= {need}")

    # Fold (N, C) into one sublane axis and pad to a multiple of 8.
    rows_total = n * c
    rows8 = _round_up(rows_total, 8)
    row_block = min(rows8, 64)                          # bounds the static chunk unroll
    rows_pad = _round_up(rows8, row_block)
    grid = (rows_pad // row_block,)

    def pad2(a, value=0):
        r, cl = a.shape
        return jnp.pad(a, ((0, rows_pad - r), (0, hw_pad - cl)),
                       constant_values=value)

    data_rows = pad2(data.reshape(rows_total, hw))
    # Expand offsets to per-(n, c) rows so the per-tap weights match the data
    # rows exactly (no sublane broadcast in the kernel).
    offy_rows = pad2(jnp.broadcast_to(
        offset[:, 0, :, :].reshape(n, 1, hw), (n, c, hw)).reshape(rows_total, hw))
    offx_rows = pad2(jnp.broadcast_to(
        offset[:, 1, :, :].reshape(n, 1, hw), (n, c, hw)).reshape(rows_total, hw))

    # Base integer pixel coordinates per lane, pre-broadcast to 8 sublanes.
    # Pad lanes get a huge sentinel so every boundary mask zeroes them.
    ys, xs = jnp.meshgrid(jnp.arange(h, dtype=jnp.int32),
                          jnp.arange(w, dtype=jnp.int32), indexing="ij")
    y_flat = jnp.pad(ys.reshape(hw), (0, hw_pad - hw), constant_values=1_000_000)
    x_flat = jnp.pad(xs.reshape(hw), (0, hw_pad - hw), constant_values=1_000_000)
    coord_y = jnp.broadcast_to(y_flat[None, :], (8, hw_pad))
    coord_x = jnp.broadcast_to(x_flat[None, :], (8, hw_pad))

    n_shift = 2 * max_shift + 1
    kernel = functools.partial(_bilinear_pool_kernel, h=h, w=w, max_shift=max_shift)

    out_rows = pl.pallas_call(
        kernel,
        out_shape=jax.ShapeDtypeStruct((rows_pad, hw_pad), data.dtype),
        grid_spec=pltpu.PrefetchScalarGridSpec(
            num_scalar_prefetch=0,
            grid=grid,
            in_specs=[
                pl.BlockSpec(memory_space=pltpu.MemorySpace.SMEM),       # trans_std (1,1)
                pl.BlockSpec((8, hw_pad), lambda i: (0, 0)),             # coord y
                pl.BlockSpec((8, hw_pad), lambda i: (0, 0)),             # coord x
                pl.BlockSpec((row_block, hw_pad), lambda i: (i, 0)),     # data rows
                pl.BlockSpec((row_block, hw_pad), lambda i: (i, 0)),     # y-offset rows
                pl.BlockSpec((row_block, hw_pad), lambda i: (i, 0)),     # x-offset rows
            ],
            out_specs=pl.BlockSpec((row_block, hw_pad), lambda i: (i, 0)),
            scratch_shapes=[
                pltpu.VMEM((n_shift, 8, hw_pad), jnp.float32),           # wy
                pltpu.VMEM((n_shift, 8, hw_pad), jnp.float32),           # wx
            ],
        ),
        compiler_params=pltpu.CompilerParams(
            dimension_semantics=("parallel",),       # row blocks shard across TCs
            vmem_limit_bytes=32 * 1024 * 1024,       # toy blocks are KB-scale; raise
                                                     # (with <64 MiB v7x headroom) for
                                                     # production-sized tiles
        ),
    )(ts.reshape(1, 1), coord_y, coord_x, data_rows, offy_rows, offx_rows)

    return out_rows[:rows_total, :hw].reshape(n, c, h, w)


def _reference(data, offset, trans_std):
    """Pure-JAX reference with identical boundary semantics (zero padding)."""
    N, C, H, W = data.shape
    ts = jnp.clip(jnp.asarray(trans_std, jnp.float32), 0.001, 0.01)
    ys, xs = jnp.meshgrid(jnp.arange(H, dtype=jnp.float32),
                          jnp.arange(W, dtype=jnp.float32), indexing="ij")
    sy = ys[None] + ts * offset[:, 0]
    sx = xs[None] + ts * offset[:, 1]
    y0 = jnp.floor(sy)
    x0 = jnp.floor(sx)
    ly = sy - y0
    lx = sx - x0
    n_idx = jnp.arange(N)[:, None, None, None]
    c_idx = jnp.arange(C)[None, :, None, None]
    out = jnp.zeros_like(data)
    for dy, wy in ((0, 1.0 - ly), (1, ly)):
        for dx, wx in ((0, 1.0 - lx), (1, lx)):
            yi = y0.astype(jnp.int32) + dy
            xi = x0.astype(jnp.int32) + dx
            valid = ((yi >= 0) & (yi < H) & (xi >= 0) & (xi < W)).astype(data.dtype)
            yc = jnp.clip(yi, 0, H - 1)
            xc = jnp.clip(xi, 0, W - 1)
            gathered = data[n_idx, c_idx, yc[:, None], xc[:, None]]
            out = out + gathered * (wy * wx * valid)[:, None]
    return out


if __name__ == "__main__":
    key = jax.random.PRNGKey(0)
    k_data, k_off = jax.random.split(key)

    N, C, H, W = 2, 4, 16, 16
    data = jax.random.normal(k_data, (N, C, H, W), dtype=jnp.float32)
    # Offsets in "raw" units; they get scaled by trans_std inside the kernel.
    offset = jax.random.normal(k_off, (N, 2, H, W), dtype=jnp.float32) * 100.0

    # Deterministic parameter init (module __init__ default).
    trans_std = 0.005

    # Static, config-derived stencil radius (computed once, outside any jit).
    ts_clamped = min(max(float(trans_std), 0.001), 0.01)
    max_shift = max(1, int(math.ceil(ts_clamped * float(jnp.max(jnp.abs(offset))))))

    out = bilinear_pooling(data, offset, trans_std, max_shift=max_shift)
    out = jax.block_until_ready(out)

    ref = _reference(data, offset, trans_std)
    assert out.shape == data.shape and out.dtype == data.dtype
    assert jnp.allclose(out, ref, atol=1e-5, rtol=1e-5), "mismatch vs reference"

    print("KERNEL_OK")
</pallas_src>

<mosaic_0001>
module attributes {stable_mosaic.version = 11 : i64} {
  func.func @_bilinear_pool_kernel(%arg0: i32, %arg1: memref<1x1xf32, #tpu.memory_space<smem>>, %arg2: memref<8x256xi32, #tpu.memory_space<vmem>>, %arg3: memref<8x256xi32, #tpu.memory_space<vmem>>, %arg4: memref<8x256xf32, #tpu.memory_space<vmem>>, %arg5: memref<8x256xf32, #tpu.memory_space<vmem>>, %arg6: memref<8x256xf32, #tpu.memory_space<vmem>>, %arg7: memref<8x256xf32, #tpu.memory_space<vmem>>, %arg8: memref<5x8x256xf32, #tpu.memory_space<vmem>>, %arg9: memref<5x8x256xf32, #tpu.memory_space<vmem>>) attributes {dimension_semantics = [#tpu.dimension_semantics<parallel>], iteration_bounds = array<i64: 1>, scalar_prefetch = 0 : i64, scratch_operands = 2 : i64, tpu.core_type = #tpu.core_type<tc>, window_params = [{transform_indices = @transform_0, window_bounds = array<i64: 1, 1>}, {pipeline_mode = #tpu.pipeline_mode<synchronous>, transform_indices = @transform_1, window_bounds = array<i64: 8, 256>}, {pipeline_mode = #tpu.pipeline_mode<synchronous>, transform_indices = @transform_2, window_bounds = array<i64: 8, 256>}, {transform_indices = @transform_3, window_bounds = array<i64: 8, 256>}, {transform_indices = @transform_4, window_bounds = array<i64: 8, 256>}, {transform_indices = @transform_5, window_bounds = array<i64: 8, 256>}, {transform_indices = @transform_6, window_bounds = array<i64: 8, 256>}]} {
    %c0 = arith.constant 0 : index
    %c0_0 = arith.constant 0 : index
    %0 = memref.load %arg1[%c0, %c0_0] : memref<1x1xf32, #tpu.memory_space<smem>>
    %c0_1 = arith.constant 0 : index
    %c0_2 = arith.constant 0 : index
    %1 = vector.load %arg2[%c0_1, %c0_2] : memref<8x256xi32, #tpu.memory_space<vmem>>, vector<8x256xi32>
    %c0_3 = arith.constant 0 : index
    %c0_4 = arith.constant 0 : index
    %2 = vector.load %arg3[%c0_3, %c0_4] : memref<8x256xi32, #tpu.memory_space<vmem>>, vector<8x256xi32>
    %c0_5 = arith.constant 0 : index
    %c0_6 = arith.constant 0 : index
    %3 = vector.load %arg4[%c0_5, %c0_6] : memref<8x256xf32, #tpu.memory_space<vmem>>, vector<8x256xf32>
    %c0_7 = arith.constant 0 : index
    %c0_8 = arith.constant 0 : index
    %4 = vector.load %arg5[%c0_7, %c0_8] : memref<8x256xf32, #tpu.memory_space<vmem>>, vector<8x256xf32>
    %5 = vector.broadcast %0 : f32 to vector<8x256xf32>
    %6 = arith.mulf %5, %4 : vector<8x256xf32>
    %c0_9 = arith.constant 0 : index
    %c0_10 = arith.constant 0 : index
    %7 = vector.load %arg6[%c0_9, %c0_10] : memref<8x256xf32, #tpu.memory_space<vmem>>, vector<8x256xf32>
    %8 = vector.broadcast %0 : f32 to vector<8x256xf32>
    %9 = arith.mulf %8, %7 : vector<8x256xf32>
    %10 = math.floor %6 : vector<8x256xf32>
    %11 = math.floor %9 : vector<8x256xf32>
    %12 = arith.subf %6, %10 : vector<8x256xf32>
    %13 = arith.subf %9, %11 : vector<8x256xf32>
    %cst = arith.constant 1.000000e+00 : f32
    %14 = vector.broadcast %cst : f32 to vector<8x256xf32>
    %15 = arith.subf %14, %12 : vector<8x256xf32>
    %cst_11 = arith.constant 1.000000e+00 : f32
    %16 = vector.broadcast %cst_11 : f32 to vector<8x256xf32>
    %17 = arith.subf %16, %13 : vector<8x256xf32>
    %18 = arith.fptosi %10 : vector<8x256xf32> to vector<8x256xi32>
    %19 = arith.fptosi %11 : vector<8x256xf32> to vector<8x256xi32>
    %c-2_i32 = arith.constant -2 : i32
    %20 = vector.broadcast %c-2_i32 : i32 to vector<8x256xi32>
    %21 = arith.cmpi eq, %18, %20 : vector<8x256xi32>
    %cst_12 = arith.constant 0.000000e+00 : f32
    %22 = vector.broadcast %cst_12 : f32 to vector<8x256xf32>
    %23 = arith.select %21, %15, %22 : vector<8x256xi1>, vector<8x256xf32>
    %c-3_i32 = arith.constant -3 : i32
    %24 = vector.broadcast %c-3_i32 : i32 to vector<8x256xi32>
    %25 = arith.cmpi eq, %18, %24 : vector<8x256xi32>
    %cst_13 = arith.constant 0.000000e+00 : f32
    %26 = vector.broadcast %cst_13 : f32 to vector<8x256xf32>
    %27 = arith.select %25, %12, %26 : vector<8x256xi1>, vector<8x256xf32>
    %28 = arith.addf %23, %27 : vector<8x256xf32>
    %c-2_i32_14 = arith.constant -2 : i32
    %29 = vector.broadcast %c-2_i32_14 : i32 to vector<8x256xi32>
    %30 = arith.addi %1, %29 : vector<8x256xi32>
    %c0_i32 = arith.constant 0 : i32
    %31 = vector.broadcast %c0_i32 : i32 to vector<8x256xi32>
    %32 = arith.cmpi sge, %30, %31 : vector<8x256xi32>
    %c16_i32 = arith.constant 16 : i32
    %33 = vector.broadcast %c16_i32 : i32 to vector<8x256xi32>
    %34 = arith.cmpi slt, %30, %33 : vector<8x256xi32>
    %35 = arith.andi %32, %34 : vector<8x256xi1>
    %cst_15 = arith.constant 0.000000e+00 : f32
    %36 = vector.broadcast %cst_15 : f32 to vector<8x256xf32>
    %37 = arith.select %35, %28, %36 : vector<8x256xi1>, vector<8x256xf32>
    %c0_16 = arith.constant 0 : index
    %c0_17 = arith.constant 0 : index
    %c0_18 = arith.constant 0 : index
    %38 = vector.load %arg8[%c0_16, %c0_17, %c0_18] : memref<5x8x256xf32, #tpu.memory_space<vmem>>, vector<1x8x256xf32>
    %39 = vector.shape_cast %38 : vector<1x8x256xf32> to vector<8x256xf32>
    %40 = vector.shape_cast %37 : vector<8x256xf32> to vector<1x8x256xf32>
    tpu.vector_store %arg8[%c0_16, %c0_17, %c0_18], %40 {strides = array<i32>} : memref<5x8x256xf32, #tpu.memory_space<vmem>>, vector<1x8x256xf32>,
    %c-2_i32_19 = arith.constant -2 : i32
    %41 = vector.broadcast %c-2_i32_19 : i32 to vector<8x256xi32>
    %42 = arith.cmpi eq, %19, %41 : vector<8x256xi32>
    %cst_20 = arith.constant 0.000000e+00 : f32
    %43 = vector.broadcast %cst_20 : f32 to vector<8x256xf32>
    %44 = arith.select %42, %17, %43 : vector<8x256xi1>, vector<8x256xf32>
    %c-3_i32_21 = arith.constant -3 : i32
    %45 = vector.broadcast %c-3_i32_21 : i32 to vector<8x256xi32>
    %46 = arith.cmpi eq, %19, %45 : vector<8x256xi32>
    %cst_22 = arith.constant 0.000000e+00 : f32
    %47 = vector.broadcast %cst_22 : f32 to vector<8x256xf32>
    %48 = arith.select %46, %13, %47 : vector<8x256xi1>, vector<8x256xf32>
    %49 = arith.addf %44, %48 : vector<8x256xf32>
    %c-2_i32_23 = arith.constant -2 : i32
    %50 = vector.broadcast %c-2_i32_23 : i32 to vector<8x256xi32>
    %51 = arith.addi %2, %50 : vector<8x256xi32>
    %c0_i32_24 = arith.constant 0 : i32
    %52 = vector.broadcast %c0_i32_24 : i32 to vector<8x256xi32>
    %53 = arith.cmpi sge, %51, %52 : vector<8x256xi32>
    %c16_i32_25 = arith.constant 16 : i32
    %54 = vector.broadcast %c16_i32_25 : i32 to vector<8x256xi32>
    %55 = arith.cmpi slt, %51, %54 : vector<8x256xi32>
    %56 = arith.andi %53, %55 : vector<8x256xi1>
    %cst_26 = arith.constant 0.000000e+00 : f32
    %57 = vector.broadcast %cst_26 : f32 to vector<8x256xf32>
    %58 = arith.select %56, %49, %57 : vector<8x256xi1>, vector<8x256xf32>
    %c0_27 = arith.constant 0 : index
    %c0_28 = arith.constant 0 : index
    %c0_29 = arith.constant 0 : index
    %59 = vector.load %arg9[%c0_27, %c0_28, %c0_29] : memref<5x8x256xf32, #tpu.memory_space<vmem>>, vector<1x8x256xf32>
    %60 = vector.shape_cast %59 : vector<1x8x256xf32> to vector<8x256xf32>
    %61 = vector.shape_cast %58 : vector<8x256xf32> to vector<1x8x256xf32>
    tpu.vector_store %arg9[%c0_27, %c0_28, %c0_29], %61 {strides = array<i32>} : memref<5x8x256xf32, #tpu.memory_space<vmem>>, vector<1x8x256xf32>,
    %c-1_i32 = arith.constant -1 : i32
    %62 = vector.broadcast %c-1_i32 : i32 to vector<8x256xi32>
    %63 = arith.cmpi eq, %18, %62 : vector<8x256xi32>
    %cst_30 = arith.constant 0.000000e+00 : f32
    %64 = vector.broadcast %cst_30 : f32 to vector<8x256xf32>
    %65 = arith.select %63, %15, %64 : vector<8x256xi1>, vector<8x256xf32>
    %c-2_i32_31 = arith.constant -2 : i32
    %66 = vector.broadcast %c-2_i32_31 : i32 to vector<8x256xi32>
    %67 = arith.cmpi eq, %18, %66 : vector<8x256xi32>
    %cst_32 = arith.constant 0.000000e+00 : f32
    %68 = vector.broadcast %cst_32 : f32 to vector<8x256xf32>
    %69 = arith.select %67, %12, %68 : vector<8x256xi1>, vector<8x256xf32>
    %70 = arith.addf %65, %69 : vector<8x256xf32>
    %c-1_i32_33 = arith.constant -1 : i32
    %71 = vector.broadcast %c-1_i32_33 : i32 to vector<8x256xi32>
    %72 = arith.addi %1, %71 : vector<8x256xi32>
    %c0_i32_34 = arith.constant 0 : i32
    %73 = vector.broadcast %c0_i32_34 : i32 to vector<8x256xi32>
    %74 = arith.cmpi sge, %72, %73 : vector<8x256xi32>
    %c16_i32_35 = arith.constant 16 : i32
    %75 = vector.broadcast %c16_i32_35 : i32 to vector<8x256xi32>
    %76 = arith.cmpi slt, %72, %75 : vector<8x256xi32>
    %77 = arith.andi %74, %76 : vector<8x256xi1>
    %cst_36 = arith.constant 0.000000e+00 : f32
    %78 = vector.broadcast %cst_36 : f32 to vector<8x256xf32>
    %79 = arith.select %77, %70, %78 : vector<8x256xi1>, vector<8x256xf32>
    %c1 = arith.constant 1 : index
    %c0_37 = arith.constant 0 : index
    %c0_38 = arith.constant 0 : index
    %80 = vector.load %arg8[%c1, %c0_37, %c0_38] : memref<5x8x256xf32, #tpu.memory_space<vmem>>, vector<1x8x256xf32>
    %81 = vector.shape_cast %80 : vector<1x8x256xf32> to vector<8x256xf32>
    %82 = vector.shape_cast %79 : vector<8x256xf32> to vector<1x8x256xf32>
    tpu.vector_store %arg8[%c1, %c0_37, %c0_38], %82 {strides = array<i32>} : memref<5x8x256xf32, #tpu.memory_space<vmem>>, vector<1x8x256xf32>,
    %c-1_i32_39 = arith.constant -1 : i32
    %83 = vector.broadcast %c-1_i32_39 : i32 to vector<8x256xi32>
    %84 = arith.cmpi eq, %19, %83 : vector<8x256xi32>
    %cst_40 = arith.constant 0.000000e+00 : f32
    %85 = vector.broadcast %cst_40 : f32 to vector<8x256xf32>
    %86 = arith.select %84, %17, %85 : vector<8x256xi1>, vector<8x256xf32>
    %c-2_i32_41 = arith.constant -2 : i32
    %87 = vector.broadcast %c-2_i32_41 : i32 to vector<8x256xi32>
    %88 = arith.cmpi eq, %19, %87 : vector<8x256xi32>
    %cst_42 = arith.constant 0.000000e+00 : f32
    %89 = vector.broadcast %cst_42 : f32 to vector<8x256xf32>
    %90 = arith.select %88, %13, %89 : vector<8x256xi1>, vector<8x256xf32>
    %91 = arith.addf %86, %90 : vector<8x256xf32>
    %c-1_i32_43 = arith.constant -1 : i32
    %92 = vector.broadcast %c-1_i32_43 : i32 to vector<8x256xi32>
    %93 = arith.addi %2, %92 : vector<8x256xi32>
    %c0_i32_44 = arith.constant 0 : i32
    %94 = vector.broadcast %c0_i32_44 : i32 to vector<8x256xi32>
    %95 = arith.cmpi sge, %93, %94 : vector<8x256xi32>
    %c16_i32_45 = arith.constant 16 : i32
    %96 = vector.broadcast %c16_i32_45 : i32 to vector<8x256xi32>
    %97 = arith.cmpi slt, %93, %96 : vector<8x256xi32>
    %98 = arith.andi %95, %97 : vector<8x256xi1>
    %cst_46 = arith.constant 0.000000e+00 : f32
    %99 = vector.broadcast %cst_46 : f32 to vector<8x256xf32>
    %100 = arith.select %98, %91, %99 : vector<8x256xi1>, vector<8x256xf32>
    %c1_47 = arith.constant 1 : index
    %c0_48 = arith.constant 0 : index
    %c0_49 = arith.constant 0 : index
    %101 = vector.load %arg9[%c1_47, %c0_48, %c0_49] : memref<5x8x256xf32, #tpu.memory_space<vmem>>, vector<1x8x256xf32>
    %102 = vector.shape_cast %101 : vector<1x8x256xf32> to vector<8x256xf32>
    %103 = vector.shape_cast %100 : vector<8x256xf32> to vector<1x8x256xf32>
    tpu.vector_store %arg9[%c1_47, %c0_48, %c0_49], %103 {strides = array<i32>} : memref<5x8x256xf32, #tpu.memory_space<vmem>>, vector<1x8x256xf32>,
    %c0_i32_50 = arith.constant 0 : i32
    %104 = vector.broadcast %c0_i32_50 : i32 to vector<8x256xi32>
    %105 = arith.cmpi eq, %18, %104 : vector<8x256xi32>
    %cst_51 = arith.constant 0.000000e+00 : f32
    %106 = vector.broadcast %cst_51 : f32 to vector<8x256xf32>
    %107 = arith.select %105, %15, %106 : vector<8x256xi1>, vector<8x256xf32>
    %c-1_i32_52 = arith.constant -1 : i32
    %108 = vector.broadcast %c-1_i32_52 : i32 to vector<8x256xi32>
    %109 = arith.cmpi eq, %18, %108 : vector<8x256xi32>
    %cst_53 = arith.constant 0.000000e+00 : f32
    %110 = vector.broadcast %cst_53 : f32 to vector<8x256xf32>
    %111 = arith.select %109, %12, %110 : vector<8x256xi1>, vector<8x256xf32>
    %112 = arith.addf %107, %111 : vector<8x256xf32>
    %c0_i32_54 = arith.constant 0 : i32
    %113 = vector.broadcast %c0_i32_54 : i32 to vector<8x256xi32>
    %114 = arith.addi %1, %113 : vector<8x256xi32>
    %c0_i32_55 = arith.constant 0 : i32
    %115 = vector.broadcast %c0_i32_55 : i32 to vector<8x256xi32>
    %116 = arith.cmpi sge, %114, %115 : vector<8x256xi32>
    %c16_i32_56 = arith.constant 16 : i32
    %117 = vector.broadcast %c16_i32_56 : i32 to vector<8x256xi32>
    %118 = arith.cmpi slt, %114, %117 : vector<8x256xi32>
    %119 = arith.andi %116, %118 : vector<8x256xi1>
    %cst_57 = arith.constant 0.000000e+00 : f32
    %120 = vector.broadcast %cst_57 : f32 to vector<8x256xf32>
    %121 = arith.select %119, %112, %120 : vector<8x256xi1>, vector<8x256xf32>
    %c2 = arith.constant 2 : index
    %c0_58 = arith.constant 0 : index
    %c0_59 = arith.constant 0 : index
    %122 = vector.load %arg8[%c2, %c0_58, %c0_59] : memref<5x8x256xf32, #tpu.memory_space<vmem>>, vector<1x8x256xf32>
    %123 = vector.shape_cast %122 : vector<1x8x256xf32> to vector<8x256xf32>
    %124 = vector.shape_cast %121 : vector<8x256xf32> to vector<1x8x256xf32>
    tpu.vector_store %arg8[%c2, %c0_58, %c0_59], %124 {strides = array<i32>} : memref<5x8x256xf32, #tpu.memory_space<vmem>>, vector<1x8x256xf32>,
    %c0_i32_60 = arith.constant 0 : i32
    %125 = vector.broadcast %c0_i32_60 : i32 to vector<8x256xi32>
    %126 = arith.cmpi eq, %19, %125 : vector<8x256xi32>
    %cst_61 = arith.constant 0.000000e+00 : f32
    %127 = vector.broadcast %cst_61 : f32 to vector<8x256xf32>
    %128 = arith.select %126, %17, %127 : vector<8x256xi1>, vector<8x256xf32>
    %c-1_i32_62 = arith.constant -1 : i32
    %129 = vector.broadcast %c-1_i32_62 : i32 to vector<8x256xi32>
    %130 = arith.cmpi eq, %19, %129 : vector<8x256xi32>
    %cst_63 = arith.constant 0.000000e+00 : f32
    %131 = vector.broadcast %cst_63 : f32 to vector<8x256xf32>
    %132 = arith.select %130, %13, %131 : vector<8x256xi1>, vector<8x256xf32>
    %133 = arith.addf %128, %132 : vector<8x256xf32>
    %c0_i32_64 = arith.constant 0 : i32
    %134 = vector.broadcast %c0_i32_64 : i32 to vector<8x256xi32>
    %135 = arith.addi %2, %134 : vector<8x256xi32>
    %c0_i32_65 = arith.constant 0 : i32
    %136 = vector.broadcast %c0_i32_65 : i32 to vector<8x256xi32>
    %137 = arith.cmpi sge, %135, %136 : vector<8x256xi32>
    %c16_i32_66 = arith.constant 16 : i32
    %138 = vector.broadcast %c16_i32_66 : i32 to vector<8x256xi32>
    %139 = arith.cmpi slt, %135, %138 : vector<8x256xi32>
    %140 = arith.andi %137, %139 : vector<8x256xi1>
    %cst_67 = arith.constant 0.000000e+00 : f32
    %141 = vector.broadcast %cst_67 : f32 to vector<8x256xf32>
    %142 = arith.select %140, %133, %141 : vector<8x256xi1>, vector<8x256xf32>
    %c2_68 = arith.constant 2 : index
    %c0_69 = arith.constant 0 : index
    %c0_70 = arith.constant 0 : index
    %143 = vector.load %arg9[%c2_68, %c0_69, %c0_70] : memref<5x8x256xf32, #tpu.memory_space<vmem>>, vector<1x8x256xf32>
    %144 = vector.shape_cast %143 : vector<1x8x256xf32> to vector<8x256xf32>
    %145 = vector.shape_cast %142 : vector<8x256xf32> to vector<1x8x256xf32>
    tpu.vector_store %arg9[%c2_68, %c0_69, %c0_70], %145 {strides = array<i32>} : memref<5x8x256xf32, #tpu.memory_space<vmem>>, vector<1x8x256xf32>,
    %c1_i32 = arith.constant 1 : i32
    %146 = vector.broadcast %c1_i32 : i32 to vector<8x256xi32>
    %147 = arith.cmpi eq, %18, %146 : vector<8x256xi32>
    %cst_71 = arith.constant 0.000000e+00 : f32
    %148 = vector.broadcast %cst_71 : f32 to vector<8x256xf32>
    %149 = arith.select %147, %15, %148 : vector<8x256xi1>, vector<8x256xf32>
    %c0_i32_72 = arith.constant 0 : i32
    %150 = vector.broadcast %c0_i32_72 : i32 to vector<8x256xi32>
    %151 = arith.cmpi eq, %18, %150 : vector<8x256xi32>
    %cst_73 = arith.constant 0.000000e+00 : f32
    %152 = vector.broadcast %cst_73 : f32 to vector<8x256xf32>
    %153 = arith.select %151, %12, %152 : vector<8x256xi1>, vector<8x256xf32>
    %154 = arith.addf %149, %153 : vector<8x256xf32>
    %c1_i32_74 = arith.constant 1 : i32
    %155 = vector.broadcast %c1_i32_74 : i32 to vector<8x256xi32>
    %156 = arith.addi %1, %155 : vector<8x256xi32>
    %c0_i32_75 = arith.constant 0 : i32
    %157 = vector.broadcast %c0_i32_75 : i32 to vector<8x256xi32>
    %158 = arith.cmpi sge, %156, %157 : vector<8x256xi32>
    %c16_i32_76 = arith.constant 16 : i32
    %159 = vector.broadcast %c16_i32_76 : i32 to vector<8x256xi32>
    %160 = arith.cmpi slt, %156, %159 : vector<8x256xi32>
    %161 = arith.andi %158, %160 : vector<8x256xi1>
    %cst_77 = arith.constant 0.000000e+00 : f32
    %162 = vector.broadcast %cst_77 : f32 to vector<8x256xf32>
    %163 = arith.select %161, %154, %162 : vector<8x256xi1>, vector<8x256xf32>
    %c3 = arith.constant 3 : index
    %c0_78 = arith.constant 0 : index
    %c0_79 = arith.constant 0 : index
    %164 = vector.load %arg8[%c3, %c0_78, %c0_79] : memref<5x8x256xf32, #tpu.memory_space<vmem>>, vector<1x8x256xf32>
    %165 = vector.shape_cast %164 : vector<1x8x256xf32> to vector<8x256xf32>
    %166 = vector.shape_cast %163 : vector<8x256xf32> to vector<1x8x256xf32>
    tpu.vector_store %arg8[%c3, %c0_78, %c0_79], %166 {strides = array<i32>} : memref<5x8x256xf32, #tpu.memory_space<vmem>>, vector<1x8x256xf32>,
    %c1_i32_80 = arith.constant 1 : i32
    %167 = vector.broadcast %c1_i32_80 : i32 to vector<8x256xi32>
    %168 = arith.cmpi eq, %19, %167 : vector<8x256xi32>
    %cst_81 = arith.constant 0.000000e+00 : f32
    %169 = vector.broadcast %cst_81 : f32 to vector<8x256xf32>
    %170 = arith.select %168, %17, %169 : vector<8x256xi1>, vector<8x256xf32>
    %c0_i32_82 = arith.constant 0 : i32
    %171 = vector.broadcast %c0_i32_82 : i32 to vector<8x256xi32>
    %172 = arith.cmpi eq, %19, %171 : vector<8x256xi32>
    %cst_83 = arith.constant 0.000000e+00 : f32
    %173 = vector.broadcast %cst_83 : f32 to vector<8x256xf32>
    %174 = arith.select %172, %13, %173 : vector<8x256xi1>, vector<8x256xf32>
    %175 = arith.addf %170, %174 : vector<8x256xf32>
    %c1_i32_84 = arith.constant 1 : i32
    %176 = vector.broadcast %c1_i32_84 : i32 to vector<8x256xi32>
    %177 = arith.addi %2, %176 : vector<8x256xi32>
    %c0_i32_85 = arith.constant 0 : i32
    %178 = vector.broadcast %c0_i32_85 : i32 to vector<8x256xi32>
    %179 = arith.cmpi sge, %177, %178 : vector<8x256xi32>
    %c16_i32_86 = arith.constant 16 : i32
    %180 = vector.broadcast %c16_i32_86 : i32 to vector<8x256xi32>
    %181 = arith.cmpi slt, %177, %180 : vector<8x256xi32>
    %182 = arith.andi %179, %181 : vector<8x256xi1>
    %cst_87 = arith.constant 0.000000e+00 : f32
    %183 = vector.broadcast %cst_87 : f32 to vector<8x256xf32>
    %184 = arith.select %182, %175, %183 : vector<8x256xi1>, vector<8x256xf32>
    %c3_88 = arith.constant 3 : index
    %c0_89 = arith.constant 0 : index
    %c0_90 = arith.constant 0 : index
    %185 = vector.load %arg9[%c3_88, %c0_89, %c0_90] : memref<5x8x256xf32, #tpu.memory_space<vmem>>, vector<1x8x256xf32>
    %186 = vector.shape_cast %185 : vector<1x8x256xf32> to vector<8x256xf32>
    %187 = vector.shape_cast %184 : vector<8x256xf32> to vector<1x8x256xf32>
    tpu.vector_store %arg9[%c3_88, %c0_89, %c0_90], %187 {strides = array<i32>} : memref<5x8x256xf32, #tpu.memory_space<vmem>>, vector<1x8x256xf32>,
    %c2_i32 = arith.constant 2 : i32
    %188 = vector.broadcast %c2_i32 : i32 to vector<8x256xi32>
    %189 = arith.cmpi eq, %18, %188 : vector<8x256xi32>
    %cst_91 = arith.constant 0.000000e+00 : f32
    %190 = vector.broadcast %cst_91 : f32 to vector<8x256xf32>
    %191 = arith.select %189, %15, %190 : vector<8x256xi1>, vector<8x256xf32>
    %c1_i32_92 = arith.constant 1 : i32
    %192 = vector.broadcast %c1_i32_92 : i32 to vector<8x256xi32>
    %193 = arith.cmpi eq, %18, %192 : vector<8x256xi32>
    %cst_93 = arith.constant 0.000000e+00 : f32
    %194 = vector.broadcast %cst_93 : f32 to vector<8x256xf32>
    %195 = arith.select %193, %12, %194 : vector<8x256xi1>, vector<8x256xf32>
    %196 = arith.addf %191, %195 : vector<8x256xf32>
    %c2_i32_94 = arith.constant 2 : i32
    %197 = vector.broadcast %c2_i32_94 : i32 to vector<8x256xi32>
    %198 = arith.addi %1, %197 : vector<8x256xi32>
    %c0_i32_95 = arith.constant 0 : i32
    %199 = vector.broadcast %c0_i32_95 : i32 to vector<8x256xi32>
    %200 = arith.cmpi sge, %198, %199 : vector<8x256xi32>
    %c16_i32_96 = arith.constant 16 : i32
    %201 = vector.broadcast %c16_i32_96 : i32 to vector<8x256xi32>
    %202 = arith.cmpi slt, %198, %201 : vector<8x256xi32>
    %203 = arith.andi %200, %202 : vector<8x256xi1>
    %cst_97 = arith.constant 0.000000e+00 : f32
    %204 = vector.broadcast %cst_97 : f32 to vector<8x256xf32>
    %205 = arith.select %203, %196, %204 : vector<8x256xi1>, vector<8x256xf32>
    %c4 = arith.constant 4 : index
    %c0_98 = arith.constant 0 : index
    %c0_99 = arith.constant 0 : index
    %206 = vector.load %arg8[%c4, %c0_98, %c0_99] : memref<5x8x256xf32, #tpu.memory_space<vmem>>, vector<1x8x256xf32>
    %207 = vector.shape_cast %206 : vector<1x8x256xf32> to vector<8x256xf32>
    %208 = vector.shape_cast %205 : vector<8x256xf32> to vector<1x8x256xf32>
    tpu.vector_store %arg8[%c4, %c0_98, %c0_99], %208 {strides = array<i32>} : memref<5x8x256xf32, #tpu.memory_space<vmem>>, vector<1x8x256xf32>,
    %c2_i32_100 = arith.constant 2 : i32
    %209 = vector.broadcast %c2_i32_100 : i32 to vector<8x256xi32>
    %210 = arith.cmpi eq, %19, %209 : vector<8x256xi32>
    %cst_101 = arith.constant 0.000000e+00 : f32
    %211 = vector.broadcast %cst_101 : f32 to vector<8x256xf32>
    %212 = arith.select %210, %17, %211 : vector<8x256xi1>, vector<8x256xf32>
    %c1_i32_102 = arith.constant 1 : i32
    %213 = vector.broadcast %c1_i32_102 : i32 to vector<8x256xi32>
    %214 = arith.cmpi eq, %19, %213 : vector<8x256xi32>
    %cst_103 = arith.constant 0.000000e+00 : f32
    %215 = vector.broadcast %cst_103 : f32 to vector<8x256xf32>
    %216 = arith.select %214, %13, %215 : vector<8x256xi1>, vector<8x256xf32>
    %217 = arith.addf %212, %216 : vector<8x256xf32>
    %c2_i32_104 = arith.constant 2 : i32
    %218 = vector.broadcast %c2_i32_104 : i32 to vector<8x256xi32>
    %219 = arith.addi %2, %218 : vector<8x256xi32>
    %c0_i32_105 = arith.constant 0 : i32
    %220 = vector.broadcast %c0_i32_105 : i32 to vector<8x256xi32>
    %221 = arith.cmpi sge, %219, %220 : vector<8x256xi32>
    %c16_i32_106 = arith.constant 16 : i32
    %222 = vector.broadcast %c16_i32_106 : i32 to vector<8x256xi32>
    %223 = arith.cmpi slt, %219, %222 : vector<8x256xi32>
    %224 = arith.andi %221, %223 : vector<8x256xi1>
    %cst_107 = arith.constant 0.000000e+00 : f32
    %225 = vector.broadcast %cst_107 : f32 to vector<8x256xf32>
    %226 = arith.select %224, %217, %225 : vector<8x256xi1>, vector<8x256xf32>
    %c4_108 = arith.constant 4 : index
    %c0_109 = arith.constant 0 : index
    %c0_110 = arith.constant 0 : index
    %227 = vector.load %arg9[%c4_108, %c0_109, %c0_110] : memref<5x8x256xf32, #tpu.memory_space<vmem>>, vector<1x8x256xf32>
    %228 = vector.shape_cast %227 : vector<1x8x256xf32> to vector<8x256xf32>
    %229 = vector.shape_cast %226 : vector<8x256xf32> to vector<1x8x256xf32>
    tpu.vector_store %arg9[%c4_108, %c0_109, %c0_110], %229 {strides = array<i32>} : memref<5x8x256xf32, #tpu.memory_space<vmem>>, vector<1x8x256xf32>,
    %cst_111 = arith.constant 0.000000e+00 : f32
    %230 = vector.broadcast %cst_111 : f32 to vector<8x256xf32>
    %cst_112 = arith.constant 0.000000e+00 : f32
    %231 = vector.broadcast %cst_112 : f32 to vector<8x256xf32>
    %c0_113 = arith.constant 0 : index
    %c0_114 = arith.constant 0 : index
    %c0_115 = arith.constant 0 : index
    %232 = vector.load %arg8[%c0_113, %c0_114, %c0_115] : memref<5x8x256xf32, #tpu.memory_space<vmem>>, vector<1x8x256xf32>
    %233 = vector.shape_cast %232 : vector<1x8x256xf32> to vector<8x256xf32>
    %c0_116 = arith.constant 0 : index
    %c0_117 = arith.constant 0 : index
    %c0_118 = arith.constant 0 : index
    %234 = vector.load %arg9[%c0_116, %c0_117, %c0_118] : memref<5x8x256xf32, #tpu.memory_space<vmem>>, vector<1x8x256xf32>
    %235 = vector.shape_cast %234 : vector<1x8x256xf32> to vector<8x256xf32>
    %236 = arith.mulf %233, %235 : vector<8x256xf32>
    %c34_i32 = arith.constant 34 : i32
    %237 = tpu.dynamic_rotate %3 by %c34_i32 dim 1 : vector<8x256xf32>, i32 -> vector<8x256xf32>
    %238 = arith.mulf %236, %237 : vector<8x256xf32>
    %239 = arith.addf %230, %238 : vector<8x256xf32>
    %c1_119 = arith.constant 1 : index
    %c0_120 = arith.constant 0 : index
    %c0_121 = arith.constant 0 : index
    %240 = vector.load %arg9[%c1_119, %c0_120, %c0_121] : memref<5x8x256xf32, #tpu.memory_space<vmem>>, vector<1x8x256xf32>
    %241 = vector.shape_cast %240 : vector<1x8x256xf32> to vector<8x256xf32>
    %242 = arith.mulf %233, %241 : vector<8x256xf32>
    %c33_i32 = arith.constant 33 : i32
    %243 = tpu.dynamic_rotate %3 by %c33_i32 dim 1 : vector<8x256xf32>, i32 -> vector<8x256xf32>
    %244 = arith.mulf %242, %243 : vector<8x256xf32>
    %245 = arith.addf %231, %244 : vector<8x256xf32>
    %c2_122 = arith.constant 2 : index
    %c0_123 = arith.constant 0 : index
    %c0_124 = arith.constant 0 : index
    %246 = vector.load %arg9[%c2_122, %c0_123, %c0_124] : memref<5x8x256xf32, #tpu.memory_space<vmem>>, vector<1x8x256xf32>
    %247 = vector.shape_cast %246 : vector<1x8x256xf32> to vector<8x256xf32>
    %248 = arith.mulf %233, %247 : vector<8x256xf32>
    %c32_i32 = arith.constant 32 : i32
    %249 = tpu.dynamic_rotate %3 by %c32_i32 dim 1 : vector<8x256xf32>, i32 -> vector<8x256xf32>
    %250 = arith.mulf %248, %249 : vector<8x256xf32>
    %251 = arith.addf %239, %250 : vector<8x256xf32>
    %c3_125 = arith.constant 3 : index
    %c0_126 = arith.constant 0 : index
    %c0_127 = arith.constant 0 : index
    %252 = vector.load %arg9[%c3_125, %c0_126, %c0_127] : memref<5x8x256xf32, #tpu.memory_space<vmem>>, vector<1x8x256xf32>
    %253 = vector.shape_cast %252 : vector<1x8x256xf32> to vector<8x256xf32>
    %254 = arith.mulf %233, %253 : vector<8x256xf32>
    %c31_i32 = arith.constant 31 : i32
    %255 = tpu.dynamic_rotate %3 by %c31_i32 dim 1 : vector<8x256xf32>, i32 -> vector<8x256xf32>
    %256 = arith.mulf %254, %255 : vector<8x256xf32>
    %257 = arith.addf %245, %256 : vector<8x256xf32>
    %c4_128 = arith.constant 4 : index
    %c0_129 = arith.constant 0 : index
    %c0_130 = arith.constant 0 : index
    %258 = vector.load %arg9[%c4_128, %c0_129, %c0_130] : memref<5x8x256xf32, #tpu.memory_space<vmem>>, vector<1x8x256xf32>
    %259 = vector.shape_cast %258 : vector<1x8x256xf32> to vector<8x256xf32>
    %260 = arith.mulf %233, %259 : vector<8x256xf32>
    %c30_i32 = arith.constant 30 : i32
    %261 = tpu.dynamic_rotate %3 by %c30_i32 dim 1 : vector<8x256xf32>, i32 -> vector<8x256xf32>
    %262 = arith.mulf %260, %261 : vector<8x256xf32>
    %263 = arith.addf %251, %262 : vector<8x256xf32>
    %c1_131 = arith.constant 1 : index
    %c0_132 = arith.constant 0 : index
    %c0_133 = arith.constant 0 : index
    %264 = vector.load %arg8[%c1_131, %c0_132, %c0_133] : memref<5x8x256xf32, #tpu.memory_space<vmem>>, vector<1x8x256xf32>
    %265 = vector.shape_cast %264 : vector<1x8x256xf32> to vector<8x256xf32>
    %c0_134 = arith.constant 0 : index
    %c0_135 = arith.constant 0 : index
    %c0_136 = arith.constant 0 : index
    %266 = vector.load %arg9[%c0_134, %c0_135, %c0_136] : memref<5x8x256xf32, #tpu.memory_space<vmem>>, vector<1x8x256xf32>
    %267 = vector.shape_cast %266 : vector<1x8x256xf32> to vector<8x256xf32>
    %268 = arith.mulf %265, %267 : vector<8x256xf32>
    %c18_i32 = arith.constant 18 : i32
    %269 = tpu.dynamic_rotate %3 by %c18_i32 dim 1 : vector<8x256xf32>, i32 -> vector<8x256xf32>
    %270 = arith.mulf %268, %269 : vector<8x256xf32>
    %271 = arith.addf %257, %270 : vector<8x256xf32>
    %c1_137 = arith.constant 1 : index
    %c0_138 = arith.constant 0 : index
    %c0_139 = arith.constant 0 : index
    %272 = vector.load %arg9[%c1_137, %c0_138, %c0_139] : memref<5x8x256xf32, #tpu.memory_space<vmem>>, vector<1x8x256xf32>
    %273 = vector.shape_cast %272 : vector<1x8x256xf32> to vector<8x256xf32>
    %274 = arith.mulf %265, %273 : vector<8x256xf32>
    %c17_i32 = arith.constant 17 : i32
    %275 = tpu.dynamic_rotate %3 by %c17_i32 dim 1 : vector<8x256xf32>, i32 -> vector<8x256xf32>
    %276 = arith.mulf %274, %275 : vector<8x256xf32>
    %277 = arith.addf %263, %276 : vector<8x256xf32>
    %c2_140 = arith.constant 2 : index
    %c0_141 = arith.constant 0 : index
    %c0_142 = arith.constant 0 : index
    %278 = vector.load %arg9[%c2_140, %c0_141, %c0_142] : memref<5x8x256xf32, #tpu.memory_space<vmem>>, vector<1x8x256xf32>
    %279 = vector.shape_cast %278 : vector<1x8x256xf32> to vector<8x256xf32>
    %280 = arith.mulf %265, %279 : vector<8x256xf32>
    %c16_i32_143 = arith.constant 16 : i32
    %281 = tpu.dynamic_rotate %3 by %c16_i32_143 dim 1 : vector<8x256xf32>, i32 -> vector<8x256xf32>
    %282 = arith.mulf %280, %281 : vector<8x256xf32>
    %283 = arith.addf %271, %282 : vector<8x256xf32>
    %c3_144 = arith.constant 3 : index
    %c0_145 = arith.constant 0 : index
    %c0_146 = arith.constant 0 : index
    %284 = vector.load %arg9[%c3_144, %c0_145, %c0_146] : memref<5x8x256xf32, #tpu.memory_space<vmem>>, vector<1x8x256xf32>
    %285 = vector.shape_cast %284 : vector<1x8x256xf32> to vector<8x256xf32>
    %286 = arith.mulf %265, %285 : vector<8x256xf32>
    %c15_i32 = arith.constant 15 : i32
    %287 = tpu.dynamic_rotate %3 by %c15_i32 dim 1 : vector<8x256xf32>, i32 -> vector<8x256xf32>
    %288 = arith.mulf %286, %287 : vector<8x256xf32>
    %289 = arith.addf %277, %288 : vector<8x256xf32>
    %c4_147 = arith.constant 4 : index
    %c0_148 = arith.constant 0 : index
    %c0_149 = arith.constant 0 : index
    %290 = vector.load %arg9[%c4_147, %c0_148, %c0_149] : memref<5x8x256xf32, #tpu.memory_space<vmem>>, vector<1x8x256xf32>
    %291 = vector.shape_cast %290 : vector<1x8x256xf32> to vector<8x256xf32>
    %292 = arith.mulf %265, %291 : vector<8x256xf32>
    %c14_i32 = arith.constant 14 : i32
    %293 = tpu.dynamic_rotate %3 by %c14_i32 dim 1 : vector<8x256xf32>, i32 -> vector<8x256xf32>
    %294 = arith.mulf %292, %293 : vector<8x256xf32>
    %295 = arith.addf %283, %294 : vector<8x256xf32>
    %c2_150 = arith.constant 2 : index
    %c0_151 = arith.constant 0 : index
    %c0_152 = arith.constant 0 : index
    %296 = vector.load %arg8[%c2_150, %c0_151, %c0_152] : memref<5x8x256xf32, #tpu.memory_space<vmem>>, vector<1x8x256xf32>
    %297 = vector.shape_cast %296 : vector<1x8x256xf32> to vector<8x256xf32>
    %c0_153 = arith.constant 0 : index
    %c0_154 = arith.constant 0 : index
    %c0_155 = arith.constant 0 : index
    %298 = vector.load %arg9[%c0_153, %c0_154, %c0_155] : memref<5x8x256xf32, #tpu.memory_space<vmem>>, vector<1x8x256xf32>
    %299 = vector.shape_cast %298 : vector<1x8x256xf32> to vector<8x256xf32>
    %300 = arith.mulf %297, %299 : vector<8x256xf32>
    %c2_i32_156 = arith.constant 2 : i32
    %301 = tpu.dynamic_rotate %3 by %c2_i32_156 dim 1 : vector<8x256xf32>, i32 -> vector<8x256xf32>
    %302 = arith.mulf %300, %301 : vector<8x256xf32>
    %303 = arith.addf %289, %302 : vector<8x256xf32>
    %c1_157 = arith.constant 1 : index
    %c0_158 = arith.constant 0 : index
    %c0_159 = arith.constant 0 : index
    %304 = vector.load %arg9[%c1_157, %c0_158, %c0_159] : memref<5x8x256xf32, #tpu.memory_space<vmem>>, vector<1x8x256xf32>
    %305 = vector.shape_cast %304 : vector<1x8x256xf32> to vector<8x256xf32>
    %306 = arith.mulf %297, %305 : vector<8x256xf32>
    %c1_i32_160 = arith.constant 1 : i32
    %307 = tpu.dynamic_rotate %3 by %c1_i32_160 dim 1 : vector<8x256xf32>, i32 -> vector<8x256xf32>
    %308 = arith.mulf %306, %307 : vector<8x256xf32>
    %309 = arith.addf %295, %308 : vector<8x256xf32>
    %c2_161 = arith.constant 2 : index
    %c0_162 = arith.constant 0 : index
    %c0_163 = arith.constant 0 : index
    %310 = vector.load %arg9[%c2_161, %c0_162, %c0_163] : memref<5x8x256xf32, #tpu.memory_space<vmem>>, vector<1x8x256xf32>
    %311 = vector.shape_cast %310 : vector<1x8x256xf32> to vector<8x256xf32>
    %312 = arith.mulf %297, %311 : vector<8x256xf32>
    %313 = arith.mulf %312, %3 : vector<8x256xf32>
    %314 = arith.addf %303, %313 : vector<8x256xf32>
    %c3_164 = arith.constant 3 : index
    %c0_165 = arith.constant 0 : index
    %c0_166 = arith.constant 0 : index
    %315 = vector.load %arg9[%c3_164, %c0_165, %c0_166] : memref<5x8x256xf32, #tpu.memory_space<vmem>>, vector<1x8x256xf32>
    %316 = vector.shape_cast %315 : vector<1x8x256xf32> to vector<8x256xf32>
    %317 = arith.mulf %297, %316 : vector<8x256xf32>
    %c255_i32 = arith.constant 255 : i32
    %318 = tpu.dynamic_rotate %3 by %c255_i32 dim 1 : vector<8x256xf32>, i32 -> vector<8x256xf32>
    %319 = arith.mulf %317, %318 : vector<8x256xf32>
    %320 = arith.addf %309, %319 : vector<8x256xf32>
    %c4_167 = arith.constant 4 : index
    %c0_168 = arith.constant 0 : index
    %c0_169 = arith.constant 0 : index
    %321 = vector.load %arg9[%c4_167, %c0_168, %c0_169] : memref<5x8x256xf32, #tpu.memory_space<vmem>>, vector<1x8x256xf32>
    %322 = vector.shape_cast %321 : vector<1x8x256xf32> to vector<8x256xf32>
    %323 = arith.mulf %297, %322 : vector<8x256xf32>
    %c254_i32 = arith.constant 254 : i32
    %324 = tpu.dynamic_rotate %3 by %c254_i32 dim 1 : vector<8x256xf32>, i32 -> vector<8x256xf32>
    %325 = arith.mulf %323, %324 : vector<8x256xf32>
    %326 = arith.addf %314, %325 : vector<8x256xf32>
    %c3_170 = arith.constant 3 : index
    %c0_171 = arith.constant 0 : index
    %c0_172 = arith.constant 0 : index
    %327 = vector.load %arg8[%c3_170, %c0_171, %c0_172] : memref<5x8x256xf32, #tpu.memory_space<vmem>>, vector<1x8x256xf32>
    %328 = vector.shape_cast %327 : vector<1x8x256xf32> to vector<8x256xf32>
    %c0_173 = arith.constant 0 : index
    %c0_174 = arith.constant 0 : index
    %c0_175 = arith.constant 0 : index
    %329 = vector.load %arg9[%c0_173, %c0_174, %c0_175] : memref<5x8x256xf32, #tpu.memory_space<vmem>>, vector<1x8x256xf32>
    %330 = vector.shape_cast %329 : vector<1x8x256xf32> to vector<8x256xf32>
    %331 = arith.mulf %328, %330 : vector<8x256xf32>
    %c242_i32 = arith.constant 242 : i32
    %332 = tpu.dynamic_rotate %3 by %c242_i32 dim 1 : vector<8x256xf32>, i32 -> vector<8x256xf32>
    %333 = arith.mulf %331, %332 : vector<8x256xf32>
    %334 = arith.addf %320, %333 : vector<8x256xf32>
    %c1_176 = arith.constant 1 : index
    %c0_177 = arith.constant 0 : index
    %c0_178 = arith.constant 0 : index
    %335 = vector.load %arg9[%c1_176, %c0_177, %c0_178] : memref<5x8x256xf32, #tpu.memory_space<vmem>>, vector<1x8x256xf32>
    %336 = vector.shape_cast %335 : vector<1x8x256xf32> to vector<8x256xf32>
    %337 = arith.mulf %328, %336 : vector<8x256xf32>
    %c241_i32 = arith.constant 241 : i32
    %338 = tpu.dynamic_rotate %3 by %c241_i32 dim 1 : vector<8x256xf32>, i32 -> vector<8x256xf32>
    %339 = arith.mulf %337, %338 : vector<8x256xf32>
    %340 = arith.addf %326, %339 : vector<8x256xf32>
    %c2_179 = arith.constant 2 : index
    %c0_180 = arith.constant 0 : index
    %c0_181 = arith.constant 0 : index
    %341 = vector.load %arg9[%c2_179, %c0_180, %c0_181] : memref<5x8x256xf32, #tpu.memory_space<vmem>>, vector<1x8x256xf32>
    %342 = vector.shape_cast %341 : vector<1x8x256xf32> to vector<8x256xf32>
    %343 = arith.mulf %328, %342 : vector<8x256xf32>
    %c240_i32 = arith.constant 240 : i32
    %344 = tpu.dynamic_rotate %3 by %c240_i32 dim 1 : vector<8x256xf32>, i32 -> vector<8x256xf32>
    %345 = arith.mulf %343, %344 : vector<8x256xf32>
    %346 = arith.addf %334, %345 : vector<8x256xf32>
    %c3_182 = arith.constant 3 : index
    %c0_183 = arith.constant 0 : index
    %c0_184 = arith.constant 0 : index
    %347 = vector.load %arg9[%c3_182, %c0_183, %c0_184] : memref<5x8x256xf32, #tpu.memory_space<vmem>>, vector<1x8x256xf32>
    %348 = vector.shape_cast %347 : vector<1x8x256xf32> to vector<8x256xf32>
    %349 = arith.mulf %328, %348 : vector<8x256xf32>
    %c239_i32 = arith.constant 239 : i32
    %350 = tpu.dynamic_rotate %3 by %c239_i32 dim 1 : vector<8x256xf32>, i32 -> vector<8x256xf32>
    %351 = arith.mulf %349, %350 : vector<8x256xf32>
    %352 = arith.addf %340, %351 : vector<8x256xf32>
    %c4_185 = arith.constant 4 : index
    %c0_186 = arith.constant 0 : index
    %c0_187 = arith.constant 0 : index
    %353 = vector.load %arg9[%c4_185, %c0_186, %c0_187] : memref<5x8x256xf32, #tpu.memory_space<vmem>>, vector<1x8x256xf32>
    %354 = vector.shape_cast %353 : vector<1x8x256xf32> to vector<8x256xf32>
    %355 = arith.mulf %328, %354 : vector<8x256xf32>
    %c238_i32 = arith.constant 238 : i32
    %356 = tpu.dynamic_rotate %3 by %c238_i32 dim 1 : vector<8x256xf32>, i32 -> vector<8x256xf32>
    %357 = arith.mulf %355, %356 : vector<8x256xf32>
    %358 = arith.addf %346, %357 : vector<8x256xf32>
    %c4_188 = arith.constant 4 : index
    %c0_189 = arith.constant 0 : index
    %c0_190 = arith.constant 0 : index
    %359 = vector.load %arg8[%c4_188, %c0_189, %c0_190] : memref<5x8x256xf32, #tpu.memory_space<vmem>>, vector<1x8x256xf32>
    %360 = vector.shape_cast %359 : vector<1x8x256xf32> to vector<8x256xf32>
    %c0_191 = arith.constant 0 : index
    %c0_192 = arith.constant 0 : index
    %c0_193 = arith.constant 0 : index
    %361 = vector.load %arg9[%c0_191, %c0_192, %c0_193] : memref<5x8x256xf32, #tpu.memory_space<vmem>>, vector<1x8x256xf32>
    %362 = vector.shape_cast %361 : vector<1x8x256xf32> to vector<8x256xf32>
    %363 = arith.mulf %360, %362 : vector<8x256xf32>
    %c226_i32 = arith.constant 226 : i32
    %364 = tpu.dynamic_rotate %3 by %c226_i32 dim 1 : vector<8x256xf32>, i32 -> vector<8x256xf32>
    %365 = arith.mulf %363, %364 : vector<8x256xf32>
    %366 = arith.addf %352, %365 : vector<8x256xf32>
    %c1_194 = arith.constant 1 : index
    %c0_195 = arith.constant 0 : index
    %c0_196 = arith.constant 0 : index
    %367 = vector.load %arg9[%c1_194, %c0_195, %c0_196] : memref<5x8x256xf32, #tpu.memory_space<vmem>>, vector<1x8x256xf32>
    %368 = vector.shape_cast %367 : vector<1x8x256xf32> to vector<8x256xf32>
    %369 = arith.mulf %360, %368 : vector<8x256xf32>
    %c225_i32 = arith.constant 225 : i32
    %370 = tpu.dynamic_rotate %3 by %c225_i32 dim 1 : vector<8x256xf32>, i32 -> vector<8x256xf32>
    %371 = arith.mulf %369, %370 : vector<8x256xf32>
    %372 = arith.addf %358, %371 : vector<8x256xf32>
    %c2_197 = arith.constant 2 : index
    %c0_198 = arith.constant 0 : index
    %c0_199 = arith.constant 0 : index
    %373 = vector.load %arg9[%c2_197, %c0_198, %c0_199] : memref<5x8x256xf32, #tpu.memory_space<vmem>>, vector<1x8x256xf32>
    %374 = vector.shape_cast %373 : vector<1x8x256xf32> to vector<8x256xf32>
    %375 = arith.mulf %360, %374 : vector<8x256xf32>
    %c224_i32 = arith.constant 224 : i32
    %376 = tpu.dynamic_rotate %3 by %c224_i32 dim 1 : vector<8x256xf32>, i32 -> vector<8x256xf32>
    %377 = arith.mulf %375, %376 : vector<8x256xf32>
    %378 = arith.addf %366, %377 : vector<8x256xf32>
    %c3_200 = arith.constant 3 : index
    %c0_201 = arith.constant 0 : index
    %c0_202 = arith.constant 0 : index
    %379 = vector.load %arg9[%c3_200, %c0_201, %c0_202] : memref<5x8x256xf32, #tpu.memory_space<vmem>>, vector<1x8x256xf32>
    %380 = vector.shape_cast %379 : vector<1x8x256xf32> to vector<8x256xf32>
    %381 = arith.mulf %360, %380 : vector<8x256xf32>
    %c223_i32 = arith.constant 223 : i32
    %382 = tpu.dynamic_rotate %3 by %c223_i32 dim 1 : vector<8x256xf32>, i32 -> vector<8x256xf32>
    %383 = arith.mulf %381, %382 : vector<8x256xf32>
    %384 = arith.addf %372, %383 : vector<8x256xf32>
    %c4_203 = arith.constant 4 : index
    %c0_204 = arith.constant 0 : index
    %c0_205 = arith.constant 0 : index
    %385 = vector.load %arg9[%c4_203, %c0_204, %c0_205] : memref<5x8x256xf32, #tpu.memory_space<vmem>>, vector<1x8x256xf32>
    %386 = vector.shape_cast %385 : vector<1x8x256xf32> to vector<8x256xf32>
    %387 = arith.mulf %360, %386 : vector<8x256xf32>
    %c222_i32 = arith.constant 222 : i32
    %388 = tpu.dynamic_rotate %3 by %c222_i32 dim 1 : vector<8x256xf32>, i32 -> vector<8x256xf32>
    %389 = arith.mulf %387, %388 : vector<8x256xf32>
    %390 = arith.addf %378, %389 : vector<8x256xf32>
    %391 = arith.addf %390, %384 : vector<8x256xf32>
    %c0_206 = arith.constant 0 : index
    %c0_207 = arith.constant 0 : index
    %392 = vector.load %arg7[%c0_206, %c0_207] : memref<8x256xf32, #tpu.memory_space<vmem>>, vector<8x256xf32>
    tpu.vector_store %arg7[%c0_206, %c0_207], %391 {strides = array<i32>} : memref<8x256xf32, #tpu.memory_space<vmem>>, vector<8x256xf32>,
    return
  }
  func.func @transform_0(%arg0: i32) -> (i32, i32) {
    %c0_i32 = arith.constant 0 : i32
    %c0_i32_0 = arith.constant 0 : i32
    %c0_i32_1 = arith.constant 0 : i32
    return %c0_i32, %c0_i32_0 : i32, i32
  }
  func.func @transform_1(%arg0: i32) -> (i32, i32) {
    %c0_i32 = arith.constant 0 : i32
    %c0_i32_0 = arith.constant 0 : i32
    %c0_i32_1 = arith.constant 0 : i32
    return %c0_i32, %c0_i32_0 : i32, i32
  }
  func.func @transform_2(%arg0: i32) -> (i32, i32) {
    %c0_i32 = arith.constant 0 : i32
    %c0_i32_0 = arith.constant 0 : i32
    %c0_i32_1 = arith.constant 0 : i32
    return %c0_i32, %c0_i32_0 : i32, i32
  }
  func.func @transform_3(%arg0: i32) -> (i32, i32) {
    %c0_i32 = arith.constant 0 : i32
    %c0_i32_0 = arith.constant 0 : i32
    return %arg0, %c0_i32 : i32, i32
  }
  func.func @transform_4(%arg0: i32) -> (i32, i32) {
    %c0_i32 = arith.constant 0 : i32
    %c0_i32_0 = arith.constant 0 : i32
    return %arg0, %c0_i32 : i32, i32
  }
  func.func @transform_5(%arg0: i32) -> (i32, i32) {
    %c0_i32 = arith.constant 0 : i32
    %c0_i32_0 = arith.constant 0 : i32
    return %arg0, %c0_i32 : i32, i32
  }
  func.func @transform_6(%arg0: i32) -> (i32, i32) {
    %c0_i32 = arith.constant 0 : i32
    %c0_i32_0 = arith.constant 0 : i32
    return %arg0, %c0_i32 : i32, i32
  }
}

</mosaic_0001>

<llo_original>
// kernel: tpu_custom_call.1
$region0: #{tpu_custom_call.1}
  #allocation0 [shape = 'u32[]', space=smem, size = 0x4, offset = 0x4, fixed_abs, tag = 'smem constant byte address 0x4 - core index']
  #allocation1 [shape = 'u32[144,128]{1,0:T(1,128)}', space=vmem, size = 0x12000, scoped, tag = 'internal scratch']
  #allocation2 [shape = 'f32[5,8,256]{2,1,0:T(8,128)}', space=vmem, size = 0xa000, scoped, tag = 'scratch operand']
  #allocation3 [shape = 'f32[5,8,256]{2,1,0:T(8,128)}', space=vmem, size = 0xa000, scoped, tag = 'scratch operand']
  #allocation4 [shape = 'f32[1,1]{1,0:T(1,128)S(6)}', space=smem, size = 0x200, scoped, tag = 'scoped memory for tpu_custom_call.1']
  %s0 = inlined_call_operand.<no memory space> [shape: f32[1,1], index: 0, kind: input, shape index: {}]
  %s1 = inlined_call_operand.hbm [shape: s32[8,256], index: 1, kind: input, shape index: {}]
  %s2 = inlined_call_operand.hbm [shape: s32[8,256], index: 2, kind: input, shape index: {}]
  %s3 = inlined_call_operand.hbm [shape: f32[8,256], index: 3, kind: input, shape index: {}]
  %s4 = inlined_call_operand.hbm [shape: f32[8,256], index: 4, kind: input, shape index: {}]
  %s5 = inlined_call_operand.vmem [shape: f32[8,256], index: 5, kind: input, shape index: {}]
  %s6 = inlined_call_operand.hbm [shape: f32[8,256], index: 6, kind: output, shape index: {}]
  %s7 = sld [smem:[#allocation0]]
  $region50: #{tpu_custom_call.1} parent=0
    _
  %s9 = ssub.s32 1, %s7
  %s10 = scalar_select 0, %s9, %s7
  %11 = sst [smem:[#allocation4]] %s0
  $region1: #{tpu_custom_call.1} parent=0
    #allocation5 [shape = 'u8[8192]{0}', space=vmem, size = 0x2000, scoped, tag = 'input window, operand 1, single buffered']
    #allocation6 [shape = 's32[1]{0}', space=sflag, size = 0x4, scoped, tag = 'scoped memory for tpu_custom_call.1']
    #allocation7 [shape = 's32[1]{0}', space=sflag, size = 0x4, scoped, tag = 'scoped memory for tpu_custom_call.1']
    #allocation8 [shape = 'u8[8192]{0}', space=vmem, size = 0x2000, scoped, tag = 'input window, operand 2, single buffered']
    #allocation9 [shape = 's32[1]{0}', space=sflag, size = 0x4, scoped, tag = 'scoped memory for tpu_custom_call.1']
    #allocation10 [shape = 'u8[8192]{0}', space=vmem, size = 0x2000, scoped, tag = 'input window, operand 3, single buffered']
    #allocation11 [shape = 'u8[8192]{0}', space=vmem, size = 0x2000, scoped, tag = 'input window, operand 4, single buffered']
    #allocation12 [shape = 's32[1]{0}', space=sflag, size = 0x4, scoped, tag = 'scoped memory for tpu_custom_call.1']
    #allocation13 [shape = 'u8[8192]{0}', space=vmem, size = 0x2000, scoped, tag = 'output window, operand 0, single buffered']
    %12 = vsyncpa [#allocation6], 0
    %13 = vsyncpa [#allocation9], 0
    %14 = vsyncpa [#allocation12], 0
    %15 = vsyncpa [#allocation7], 0
    // Predicated region
    $region2: #{tpu_custom_call.1} parent=1 // pred_check
      _
    $region3: #{tpu_custom_call.1} parent=1 // pred_check_branch
      %17 = sbr.rel (0) target = $region5
    $region4: #{tpu_custom_call.1} parent=1 // pred_region
      _
    $region5: #{tpu_custom_call.1} parent=1 // pred_fallthru
      _
    // Predicated region
    $region6: #{tpu_custom_call.1} parent=1 // pred_check
      _
    $region7: #{tpu_custom_call.1} parent=1 // pred_check_branch
      %19 = sbr.rel (0) target = $region9
    $region8: #{tpu_custom_call.1} parent=1 // pred_region
      %s21 = ssub.s32 256, 256
      %22 = vsyncadd [#allocation6], %s21
      %s24 = sshll.u32 [#allocation5], 4
      %s25 = int_to_ptr.vmem [resolvable:$true] %s24
      %27 = dma.hbm_to_vmem [thread:$0]  %s1, 256, %s25, [#allocation6]
    $region9: #{tpu_custom_call.1} parent=1 // pred_fallthru
      _
    // Predicated region
    $region10: #{tpu_custom_call.1} parent=1 // pred_check
      _
    $region11: #{tpu_custom_call.1} parent=1 // pred_check_branch
      %29 = sbr.rel (0) target = $region13
    $region12: #{tpu_custom_call.1} parent=1 // pred_region
      %s31 = ssub.s32 256, 256
      %32 = vsyncadd [#allocation9], %s31
      %s34 = sshll.u32 [#allocation8], 4
      %s35 = int_to_ptr.vmem [resolvable:$true] %s34
      %37 = dma.hbm_to_vmem [thread:$0]  %s2, 256, %s35, [#allocation9]
    $region13: #{tpu_custom_call.1} parent=1 // pred_fallthru
      _
    // Predicated region
    $region14: #{tpu_custom_call.1} parent=1 // pred_check
      _
    $region15: #{tpu_custom_call.1} parent=1 // pred_check_branch
      %39 = sbr.rel (0) target = $region17
    $region16: #{tpu_custom_call.1} parent=1 // pred_region
      %s41 = ssub.s32 256, 256
      %42 = vsyncadd [#allocation9], %s41
      %s44 = sshll.u32 [#allocation10], 4
      %s45 = int_to_ptr.vmem [resolvable:$true] %s44
      %47 = dma.hbm_to_vmem [thread:$0]  %s3, 256, %s45, [#allocation9]
    $region17: #{tpu_custom_call.1} parent=1 // pred_fallthru
      _
    // Predicated region
    $region18: #{tpu_custom_call.1} parent=1 // pred_check
      _
    $region19: #{tpu_custom_call.1} parent=1 // pred_check_branch
      %49 = sbr.rel (0) target = $region21
    $region20: #{tpu_custom_call.1} parent=1 // pred_region
      %s51 = ssub.s32 256, 256
      %52 = vsyncadd [#allocation12], %s51
      %s54 = sshll.u32 [#allocation11], 4
      %s55 = int_to_ptr.vmem [resolvable:$true] %s54
      %57 = dma.hbm_to_vmem [thread:$0]  %s4, 256, %s55, [#allocation12]
    $region21: #{tpu_custom_call.1} parent=1 // pred_fallthru
      _
    // Predicated region
    $region22: #{tpu_custom_call.1} parent=1 // pred_check
      _
    $region23: #{tpu_custom_call.1} parent=1 // pred_check_branch
      %59 = sbr.rel (0) target = $region25
    $region24: #{tpu_custom_call.1} parent=1 // pred_region
      _
    $region25: #{tpu_custom_call.1} parent=1 // pred_fallthru
      _
    // Predicated region
    $region26: #{tpu_custom_call.1} parent=1 // pred_check
      _
    $region27: #{tpu_custom_call.1} parent=1 // pred_check_branch
      %61 = sbr.rel (0) target = $region29
    $region28: #{tpu_custom_call.1} parent=1 // pred_region
      %62 = dma.done [#allocation6], 256
    $region29: #{tpu_custom_call.1} parent=1 // pred_fallthru
      _
    // Predicated region
    $region30: #{tpu_custom_call.1} parent=1 // pred_check
      _
    $region31: #{tpu_custom_call.1} parent=1 // pred_check_branch
      %64 = sbr.rel (0) target = $region33
    $region32: #{tpu_custom_call.1} parent=1 // pred_region
      %65 = dma.done [#allocation9], 256
    $region33: #{tpu_custom_call.1} parent=1 // pred_fallthru
      _
    // Predicated region
    $region34: #{tpu_custom_call.1} parent=1 // pred_check
      _
    $region35: #{tpu_custom_call.1} parent=1 // pred_check_branch
      %67 = sbr.rel (0) target = $region37
    $region36: #{tpu_custom_call.1} parent=1 // pred_region
      %68 = dma.done [#allocation9], 256
    $region37: #{tpu_custom_call.1} parent=1 // pred_fallthru
      _
    // Predicated region
    $region38: #{tpu_custom_call.1} parent=1 // pred_check
      _
    $region39: #{tpu_custom_call.1} parent=1 // pred_check_branch
      %70 = sbr.rel (0) target = $region41
    $region40: #{tpu_custom_call.1} parent=1 // pred_region
      %71 = dma.done [#allocation12], 256
    $region41: #{tpu_custom_call.1} parent=1 // pred_fallthru
      _
    %s72 = sld [smem:[#allocation4]]
    %v73 = vld [vmem:[#allocation5] sm:$0xff]
    %v74 = vld [vmem:[#allocation5 + $0x8] sm:$0xff]
    %v75 = vld [vmem:[#allocation8] sm:$0xff]
    %v76 = vld [vmem:[#allocation8 + $0x8] sm:$0xff]
    %v77 = vld [vmem:[#allocation10] sm:$0xff]
    %v78 = vld [vmem:[#allocation10 + $0x8] sm:$0xff]
    %v79 = vld [vmem:[#allocation11] sm:$0xff]
    %v80 = vld [vmem:[#allocation11 + $0x8] sm:$0xff]
    %v81 = vstv %s72
    %v82 = vmul.f32 %v81, %v79
    %v83 = vmul.f32 %v81, %v80
    %v84 = vld [vmem:[%s5] sm:$0xff]
    %v85 = vld [vmem:[%s5 + $0x8] sm:$0xff]
    %v86 = vmul.f32 %v81, %v84
    %v87 = vmul.f32 %v81, %v85
    %v88 = vfloor.f32 %v82
    %v89 = vfloor.f32 %v83
    %v90 = vfloor.f32 %v86
    %v91 = vfloor.f32 %v87
    %v92 = vsub.f32 %v82, %v88
    %v93 = vsub.f32 %v83, %v89
    %v94 = vsub.f32 %v86, %v90
    %v95 = vsub.f32 %v87, %v91
    %v96 = vsub.f32 1.0, %v92
    %v97 = vsub.f32 1.0, %v93
    %v98 = vsub.f32 1.0, %v94
    %v99 = vsub.f32 1.0, %v95
    %v100 = vcvt.f32.s32.to.zero.pseudo %v88
    %v101 = vcvt.f32.s32.to.zero.pseudo %v89
    %v102 = vcvt.f32.s32.to.zero.pseudo %v90
    %v103 = vcvt.f32.s32.to.zero.pseudo %v91
    %vm104 = vcmp.eq.s32.totalorder %v100, 4294967294
    %vm105 = vcmp.eq.s32.totalorder %v101, 4294967294
    %v106 = vsel %vm104, %v96, 0.0
    %v107 = vsel %vm105, %v97, 0.0
    %vm108 = vcmp.eq.s32.totalorder %v100, 4294967293
    %vm109 = vcmp.eq.s32.totalorder %v101, 4294967293
    %v110 = vsel %vm108, %v92, 0.0
    %v111 = vsel %vm109, %v93, 0.0
    %v112 = vadd.f32 %v106, %v110
    %v113 = vadd.f32 %v107, %v111
    %v114 = vadd.s32 %v73, 4294967294
    %v115 = vadd.s32 %v74, 4294967294
    %vm116 = vcmp.ge.s32.totalorder %v114, 0
    %vm117 = vcmp.ge.s32.totalorder %v115, 0
    %vm118 = vcmp.lt.s32.totalorder %v114, 16
    %vm119 = vcmp.lt.s32.totalorder %v115, 16
    %vm120 = vmand %vm116, %vm118
    %vm121 = vmand %vm117, %vm119
    %v122 = vsel %vm120, %v112, 0.0
    %v123 = vsel %vm121, %v113, 0.0
    %124 = vst [vmem:[#allocation2] sm:$0xff] %v122
    %125 = vst [vmem:[#allocation2 + $0x8] sm:$0xff] %v123
    %vm126 = vcmp.eq.s32.totalorder %v102, 4294967294
    %vm127 = vcmp.eq.s32.totalorder %v103, 4294967294
    %v128 = vsel %vm126, %v98, 0.0
    %v129 = vsel %vm127, %v99, 0.0
    %vm130 = vcmp.eq.s32.totalorder %v102, 4294967293
    %vm131 = vcmp.eq.s32.totalorder %v103, 4294967293
    %v132 = vsel %vm130, %v94, 0.0
    %v133 = vsel %vm131, %v95, 0.0
    %v134 = vadd.f32 %v128, %v132
    %v135 = vadd.f32 %v129, %v133
    %v136 = vadd.s32 %v75, 4294967294
    %v137 = vadd.s32 %v76, 4294967294
    %vm138 = vcmp.ge.s32.totalorder %v136, 0
    %vm139 = vcmp.ge.s32.totalorder %v137, 0
    %vm140 = vcmp.lt.s32.totalorder %v136, 16
    %vm141 = vcmp.lt.s32.totalorder %v137, 16
    %vm142 = vmand %vm138, %vm140
    %vm143 = vmand %vm139, %vm141
    %v144 = vsel %vm142, %v134, 0.0
    %v145 = vsel %vm143, %v135, 0.0
    %146 = vst [vmem:[#allocation3] sm:$0xff] %v144
    %147 = vst [vmem:[#allocation3 + $0x8] sm:$0xff] %v145
    %vm148 = vcmp.eq.s32.totalorder %v100, 4294967295
    %vm149 = vcmp.eq.s32.totalorder %v101, 4294967295
    %v150 = vsel %vm148, %v96, 0.0
    %v151 = vsel %vm149, %v97, 0.0
    %v152 = vsel %vm104, %v92, 0.0
    %v153 = vsel %vm105, %v93, 0.0
    %v154 = vadd.f32 %v150, %v152
    %v155 = vadd.f32 %v151, %v153
    %v156 = vadd.s32 %v73, 4294967295
    %v157 = vadd.s32 %v74, 4294967295
    %vm158 = vcmp.ge.s32.totalorder %v156, 0
    %vm159 = vcmp.ge.s32.totalorder %v157, 0
    %vm160 = vcmp.lt.s32.totalorder %v156, 16
    %vm161 = vcmp.lt.s32.totalorder %v157, 16
    %vm162 = vmand %vm158, %vm160
    %vm163 = vmand %vm159, %vm161
    %v164 = vsel %vm162, %v154, 0.0
    %v165 = vsel %vm163, %v155, 0.0
    %s166 = scalar_lea.vmem [#allocation2], 16
    %167 = vst [vmem:[%s166] sm:$0xff] %v164
    %168 = vst [vmem:[%s166 + $0x8] sm:$0xff] %v165
    %vm169 = vcmp.eq.s32.totalorder %v102, 4294967295
    %vm170 = vcmp.eq.s32.totalorder %v103, 4294967295
    %v171 = vsel %vm169, %v98, 0.0
    %v172 = vsel %vm170, %v99, 0.0
    %v173 = vsel %vm126, %v94, 0.0
    %v174 = vsel %vm127, %v95, 0.0
    %v175 = vadd.f32 %v171, %v173
    %v176 = vadd.f32 %v172, %v174
    %v177 = vadd.s32 %v75, 4294967295
    %v178 = vadd.s32 %v76, 4294967295
    %vm179 = vcmp.ge.s32.totalorder %v177, 0
    %vm180 = vcmp.ge.s32.totalorder %v178, 0
    %vm181 = vcmp.lt.s32.totalorder %v177, 16
    %vm182 = vcmp.lt.s32.totalorder %v178, 16
    %vm183 = vmand %vm179, %vm181
    %vm184 = vmand %vm180, %vm182
    %v185 = vsel %vm183, %v175, 0.0
    %v186 = vsel %vm184, %v176, 0.0
    %s187 = scalar_lea.vmem [#allocation3], 16
    %188 = vst [vmem:[%s187] sm:$0xff] %v185
    %189 = vst [vmem:[%s187 + $0x8] sm:$0xff] %v186
    %vm190 = vcmp.eq.s32.totalorder %v100, 0
    %vm191 = vcmp.eq.s32.totalorder %v101, 0
    %v192 = vsel %vm190, %v96, 0.0
    %v193 = vsel %vm191, %v97, 0.0
    %v194 = vsel %vm148, %v92, 0.0
    %v195 = vsel %vm149, %v93, 0.0
    %v196 = vadd.f32 %v192, %v194
    %v197 = vadd.f32 %v193, %v195
    %vm198 = vcmp.ge.s32.totalorder %v73, 0
    %vm199 = vcmp.ge.s32.totalorder %v74, 0
    %vm200 = vcmp.lt.s32.totalorder %v73, 16
    %vm201 = vcmp.lt.s32.totalorder %v74, 16
    %vm202 = vmand %vm198, %vm200
    %vm203 = vmand %vm199, %vm201
    %v204 = vsel %vm202, %v196, 0.0
    %v205 = vsel %vm203, %v197, 0.0
    %s206 = scalar_lea.vmem [#allocation2], 32
    %207 = vst [vmem:[%s206] sm:$0xff] %v204
    %208 = vst [vmem:[%s206 + $0x8] sm:$0xff] %v205
    %vm209 = vcmp.eq.s32.totalorder %v102, 0
    %vm210 = vcmp.eq.s32.totalorder %v103, 0
    %v211 = vsel %vm209, %v98, 0.0
    %v212 = vsel %vm210, %v99, 0.0
    %v213 = vsel %vm169, %v94, 0.0
    %v214 = vsel %vm170, %v95, 0.0
    %v215 = vadd.f32 %v211, %v213
    %v216 = vadd.f32 %v212, %v214
    %vm217 = vcmp.ge.s32.totalorder %v75, 0
    %vm218 = vcmp.ge.s32.totalorder %v76, 0
    %vm219 = vcmp.lt.s32.totalorder %v75, 16
    %vm220 = vcmp.lt.s32.totalorder %v76, 16
    %vm221 = vmand %vm217, %vm219
    %vm222 = vmand %vm218, %vm220
    %v223 = vsel %vm221, %v215, 0.0
    %v224 = vsel %vm222, %v216, 0.0
    %s225 = scalar_lea.vmem [#allocation3], 32
    %226 = vst [vmem:[%s225] sm:$0xff] %v223
    %227 = vst [vmem:[%s225 + $0x8] sm:$0xff] %v224
    %vm228 = vcmp.eq.s32.totalorder %v100, 1
    %vm229 = vcmp.eq.s32.totalorder %v101, 1
    %v230 = vsel %vm228, %v96, 0.0
    %v231 = vsel %vm229, %v97, 0.0
    %v232 = vsel %vm190, %v92, 0.0
    %v233 = vsel %vm191, %v93, 0.0
    %v234 = vadd.f32 %v230, %v232
    %v235 = vadd.f32 %v231, %v233
    %v236 = vadd.s32 %v73, 1
    %v237 = vadd.s32 %v74, 1
    %vm238 = vcmp.ge.s32.totalorder %v236, 0
    %vm239 = vcmp.ge.s32.totalorder %v237, 0
    %vm240 = vcmp.lt.s32.totalorder %v236, 16
    %vm241 = vcmp.lt.s32.totalorder %v237, 16
    %vm242 = vmand %vm238, %vm240
    %vm243 = vmand %vm239, %vm241
    %v244 = vsel %vm242, %v234, 0.0
    %v245 = vsel %vm243, %v235, 0.0
    %s246 = scalar_lea.vmem [#allocation2], 48
    %247 = vst [vmem:[%s246] sm:$0xff] %v244
    %248 = vst [vmem:[%s246 + $0x8] sm:$0xff] %v245
    %vm249 = vcmp.eq.s32.totalorder %v102, 1
    %vm250 = vcmp.eq.s32.totalorder %v103, 1
    %v251 = vsel %vm249, %v98, 0.0
    %v252 = vsel %vm250, %v99, 0.0
    %v253 = vsel %vm209, %v94, 0.0
    %v254 = vsel %vm210, %v95, 0.0
    %v255 = vadd.f32 %v251, %v253
    %v256 = vadd.f32 %v252, %v254
    %v257 = vadd.s32 %v75, 1
    %v258 = vadd.s32 %v76, 1
    %vm259 = vcmp.ge.s32.totalorder %v257, 0
    %vm260 = vcmp.ge.s32.totalorder %v258, 0
    %vm261 = vcmp.lt.s32.totalorder %v257, 16
    %vm262 = vcmp.lt.s32.totalorder %v258, 16
    %vm263 = vmand %vm259, %vm261
    %vm264 = vmand %vm260, %vm262
    %v265 = vsel %vm263, %v255, 0.0
    %v266 = vsel %vm264, %v256, 0.0
    %s267 = scalar_lea.vmem [#allocation3], 48
    %268 = vst [vmem:[%s267] sm:$0xff] %v265
    %269 = vst [vmem:[%s267 + $0x8] sm:$0xff] %v266
    %vm270 = vcmp.eq.s32.totalorder %v100, 2
    %vm271 = vcmp.eq.s32.totalorder %v101, 2
    %v272 = vsel %vm270, %v96, 0.0
    %v273 = vsel %vm271, %v97, 0.0
    %v274 = vsel %vm228, %v92, 0.0
    %v275 = vsel %vm229, %v93, 0.0
    %v276 = vadd.f32 %v272, %v274
    %v277 = vadd.f32 %v273, %v275
    %v278 = vadd.s32 %v73, 2
    %v279 = vadd.s32 %v74, 2
    %vm280 = vcmp.ge.s32.totalorder %v278, 0
    %vm281 = vcmp.ge.s32.totalorder %v279, 0
    %vm282 = vcmp.lt.s32.totalorder %v278, 16
    %vm283 = vcmp.lt.s32.totalorder %v279, 16
    %vm284 = vmand %vm280, %vm282
    %vm285 = vmand %vm281, %vm283
    %v286 = vsel %vm284, %v276, 0.0
    %v287 = vsel %vm285, %v277, 0.0
    %s288 = scalar_lea.vmem [#allocation2], 64
    %289 = vst [vmem:[%s288] sm:$0xff] %v286
    %290 = vst [vmem:[%s288 + $0x8] sm:$0xff] %v287
    %vm291 = vcmp.eq.s32.totalorder %v102, 2
    %vm292 = vcmp.eq.s32.totalorder %v103, 2
    %v293 = vsel %vm291, %v98, 0.0
    %v294 = vsel %vm292, %v99, 0.0
    %v295 = vsel %vm249, %v94, 0.0
    %v296 = vsel %vm250, %v95, 0.0
    %v297 = vadd.f32 %v293, %v295
    %v298 = vadd.f32 %v294, %v296
    %v299 = vadd.s32 %v75, 2
    %v300 = vadd.s32 %v76, 2
    %vm301 = vcmp.ge.s32.totalorder %v299, 0
    %vm302 = vcmp.ge.s32.totalorder %v300, 0
    %vm303 = vcmp.lt.s32.totalorder %v299, 16
    %vm304 = vcmp.lt.s32.totalorder %v300, 16
    %vm305 = vmand %vm301, %vm303
    %vm306 = vmand %vm302, %vm304
    %v307 = vsel %vm305, %v297, 0.0
    %v308 = vsel %vm306, %v298, 0.0
    %s309 = scalar_lea.vmem [#allocation3], 64
    %310 = vst [vmem:[%s309] sm:$0xff] %v307
    %311 = vst [vmem:[%s309 + $0x8] sm:$0xff] %v308
    %v312 = vld [vmem:[#allocation2] sm:$0xff]
    %v313 = vld [vmem:[#allocation2 + $0x8] sm:$0xff]
    %v314 = vld [vmem:[#allocation3] sm:$0xff]
    %v315 = vld [vmem:[#allocation3 + $0x8] sm:$0xff]
    %v316 = vmul.f32 %v312, %v314
    %v317 = vmul.f32 %v313, %v315
    %318 = vrot.lane.b32.xlu0 %v77, 34
    %v319 = vpop.permute.xlu0 %318
    %320 = vrot.lane.b32.xlu0 %v78, 34
    %v321 = vpop.permute.xlu0 %320
    %v322 = vlaneseq
    %v323 = vand.u32 %v322, 127
    %vm324 = vcmp.lt.s32.totalorder %v323, 34
    %v325 = vsel %vm324, %v319, %v321
    %v326 = vsel %vm324, %v321, %v319
    %v327 = vmul.f32 %v316, %v326
    %v328 = vmul.f32 %v317, %v325
    %v329 = vadd.f32 %v327, 0.0
    %v330 = vadd.f32 %v328, 0.0
    %v331 = vld [vmem:[%s187] sm:$0xff]
    %v332 = vld [vmem:[%s187 + $0x8] sm:$0xff]
    %v333 = vmul.f32 %v312, %v331
    %v334 = vmul.f32 %v313, %v332
    %335 = vrot.lane.b32.xlu0 %v77, 33
    %v336 = vpop.permute.xlu0 %335
    %337 = vrot.lane.b32.xlu0 %v78, 33
    %v338 = vpop.permute.xlu0 %337
    %vm339 = vcmp.lt.s32.totalorder %v323, 33
    %v340 = vsel %vm339, %v336, %v338
    %v341 = vsel %vm339, %v338, %v336
    %v342 = vmul.f32 %v333, %v341
    %v343 = vmul.f32 %v334, %v340
    %v344 = vadd.f32 %v342, 0.0
    %v345 = vadd.f32 %v343, 0.0
    %v346 = vld [vmem:[%s225] sm:$0xff]
    %v347 = vld [vmem:[%s225 + $0x8] sm:$0xff]
    %v348 = vmul.f32 %v312, %v346
    %v349 = vmul.f32 %v313, %v347
    %350 = vrot.lane.b32.xlu0 %v77, 32
    %v351 = vpop.permute.xlu0 %350
    %352 = vrot.lane.b32.xlu0 %v78, 32
    %v353 = vpop.permute.xlu0 %352
    %vm354 = vcmp.lt.s32.totalorder %v323, 32
    %v355 = vsel %vm354, %v351, %v353
    %v356 = vsel %vm354, %v353, %v351
    %v357 = vmul.f32 %v348, %v356
    %v358 = vmul.f32 %v349, %v355
    %v359 = vadd.f32 %v329, %v357
    %v360 = vadd.f32 %v330, %v358
    %v361 = vld [vmem:[%s267] sm:$0xff]
    %v362 = vld [vmem:[%s267 + $0x8] sm:$0xff]
    %v363 = vmul.f32 %v312, %v361
    %v364 = vmul.f32 %v313, %v362
    %365 = vrot.lane.b32.xlu0 %v77, 31
    %v366 = vpop.permute.xlu0 %365
    %367 = vrot.lane.b32.xlu0 %v78, 31
    %v368 = vpop.permute.xlu0 %367
    %vm369 = vcmp.lt.s32.totalorder %v323, 31
    %v370 = vsel %vm369, %v366, %v368
    %v371 = vsel %vm369, %v368, %v366
    %v372 = vmul.f32 %v363, %v371
    %v373 = vmul.f32 %v364, %v370
    %v374 = vadd.f32 %v344, %v372
    %v375 = vadd.f32 %v345, %v373
    %v376 = vld [vmem:[%s309] sm:$0xff]
    %v377 = vld [vmem:[%s309 + $0x8] sm:$0xff]
    %v378 = vmul.f32 %v312, %v376
    %v379 = vmul.f32 %v313, %v377
    %380 = vrot.lane.b32.xlu0 %v77, 30
    %v381 = vpop.permute.xlu0 %380
    %382 = vrot.lane.b32.xlu0 %v78, 30
    %v383 = vpop.permute.xlu0 %382
    %vm384 = vcmp.lt.s32.totalorder %v323, 30
    %v385 = vsel %vm384, %v381, %v383
    %v386 = vsel %vm384, %v383, %v381
    %v387 = vmul.f32 %v378, %v386
    %v388 = vmul.f32 %v379, %v385
    %v389 = vadd.f32 %v359, %v387
    %v390 = vadd.f32 %v360, %v388
    %v391 = vld [vmem:[%s166] sm:$0xff]
    %v392 = vld [vmem:[%s166 + $0x8] sm:$0xff]
    %v393 = vmul.f32 %v391, %v314
    %v394 = vmul.f32 %v392, %v315
    %395 = vrot.lane.b32.xlu0 %v77, 18
    %v396 = vpop.permute.xlu0 %395
    %397 = vrot.lane.b32.xlu0 %v78, 18
    %v398 = vpop.permute.xlu0 %397
    %vm399 = vcmp.lt.s32.totalorder %v323, 18
    %v400 = vsel %vm399, %v396, %v398
    %v401 = vsel %vm399, %v398, %v396
    %v402 = vmul.f32 %v393, %v401
    %v403 = vmul.f32 %v394, %v400
    %v404 = vadd.f32 %v374, %v402
    %v405 = vadd.f32 %v375, %v403
    %v406 = vmul.f32 %v391, %v331
    %v407 = vmul.f32 %v392, %v332
    %408 = vrot.lane.b32.xlu0 %v77, 17
    %v409 = vpop.permute.xlu0 %408
    %410 = vrot.lane.b32.xlu0 %v78, 17
    %v411 = vpop.permute.xlu0 %410
    %vm412 = vcmp.lt.s32.totalorder %v323, 17
    %v413 = vsel %vm412, %v409, %v411
    %v414 = vsel %vm412, %v411, %v409
    %v415 = vmul.f32 %v406, %v414
    %v416 = vmul.f32 %v407, %v413
    %v417 = vadd.f32 %v389, %v415
    %v418 = vadd.f32 %v390, %v416
    %v419 = vmul.f32 %v391, %v346
    %v420 = vmul.f32 %v392, %v347
    %421 = vrot.lane.b32.xlu0 %v77, 16
    %v422 = vpop.permute.xlu0 %421
    %423 = vrot.lane.b32.xlu0 %v78, 16
    %v424 = vpop.permute.xlu0 %423
    %vm425 = vcmp.lt.s32.totalorder %v323, 16
    %v426 = vsel %vm425, %v422, %v424
    %v427 = vsel %vm425, %v424, %v422
    %v428 = vmul.f32 %v419, %v427
    %v429 = vmul.f32 %v420, %v426
    %v430 = vadd.f32 %v404, %v428
    %v431 = vadd.f32 %v405, %v429
    %v432 = vmul.f32 %v391, %v361
    %v433 = vmul.f32 %v392, %v362
    %434 = vrot.lane.b32.xlu0 %v77, 15
    %v435 = vpop.permute.xlu0 %434
    %436 = vrot.lane.b32.xlu0 %v78, 15
    %v437 = vpop.permute.xlu0 %436
    %vm438 = vcmp.lt.s32.totalorder %v323, 15
    %v439 = vsel %vm438, %v435, %v437
    %v440 = vsel %vm438, %v437, %v435
    %v441 = vmul.f32 %v432, %v440
    %v442 = vmul.f32 %v433, %v439
    %v443 = vadd.f32 %v417, %v441
    %v444 = vadd.f32 %v418, %v442
    %v445 = vmul.f32 %v391, %v376
    %v446 = vmul.f32 %v392, %v377
    %447 = vrot.lane.b32.xlu0 %v77, 14
    %v448 = vpop.permute.xlu0 %447
    %449 = vrot.lane.b32.xlu0 %v78, 14
    %v450 = vpop.permute.xlu0 %449
    %vm451 = vcmp.lt.s32.totalorder %v323, 14
    %v452 = vsel %vm451, %v448, %v450
    %v453 = vsel %vm451, %v450, %v448
    %v454 = vmul.f32 %v445, %v453
    %v455 = vmul.f32 %v446, %v452
    %v456 = vadd.f32 %v430, %v454
    %v457 = vadd.f32 %v431, %v455
    %v458 = vld [vmem:[%s206] sm:$0xff]
    %v459 = vld [vmem:[%s206 + $0x8] sm:$0xff]
    %v460 = vmul.f32 %v458, %v314
    %v461 = vmul.f32 %v459, %v315
    %462 = vrot.lane.b32.xlu0 %v77, 2
    %v463 = vpop.permute.xlu0 %462
    %464 = vrot.lane.b32.xlu0 %v78, 2
    %v465 = vpop.permute.xlu0 %464
    %vm466 = vcmp.lt.s32.totalorder %v323, 2
    %v467 = vsel %vm466, %v463, %v465
    %v468 = vsel %vm466, %v465, %v463
    %v469 = vmul.f32 %v460, %v468
    %v470 = vmul.f32 %v461, %v467
    %v471 = vadd.f32 %v443, %v469
    %v472 = vadd.f32 %v444, %v470
    %v473 = vmul.f32 %v458, %v331
    %v474 = vmul.f32 %v459, %v332
    %475 = vrot.lane.b32.xlu0 %v77, 1
    %v476 = vpop.permute.xlu0 %475
    %477 = vrot.lane.b32.xlu0 %v78, 1
    %v478 = vpop.permute.xlu0 %477
    %vm479 = vcmp.lt.s32.totalorder %v323, 1
    %v480 = vsel %vm479, %v476, %v478
    %v481 = vsel %vm479, %v478, %v476
    %v482 = vmul.f32 %v473, %v481
    %v483 = vmul.f32 %v474, %v480
    %v484 = vadd.f32 %v456, %v482
    %v485 = vadd.f32 %v457, %v483
    %v486 = vmul.f32 %v458, %v346
    %v487 = vmul.f32 %v459, %v347
    %v488 = vmul.f32 %v486, %v77
    %v489 = vmul.f32 %v487, %v78
    %v490 = vadd.f32 %v471, %v488
    %v491 = vadd.f32 %v472, %v489
    %v492 = vmul.f32 %v458, %v361
    %v493 = vmul.f32 %v459, %v362
    %494 = vrot.lane.b32.xlu0 %v77, 127
    %v495 = vpop.permute.xlu0 %494
    %496 = vrot.lane.b32.xlu0 %v78, 127
    %v497 = vpop.permute.xlu0 %496
    %vm498 = vcmp.lt.s32.totalorder %v323, 127
    %v499 = vsel %vm498, %v495, %v497
    %v500 = vsel %vm498, %v497, %v495
    %v501 = vmul.f32 %v492, %v499
    %v502 = vmul.f32 %v493, %v500
    %v503 = vadd.f32 %v484, %v501
    %v504 = vadd.f32 %v485, %v502
    %v505 = vmul.f32 %v458, %v376
    %v506 = vmul.f32 %v459, %v377
    %507 = vrot.lane.b32.xlu0 %v77, 126
    %v508 = vpop.permute.xlu0 %507
    %509 = vrot.lane.b32.xlu0 %v78, 126
    %v510 = vpop.permute.xlu0 %509
    %vm511 = vcmp.lt.s32.totalorder %v323, 126
    %v512 = vsel %vm511, %v508, %v510
    %v513 = vsel %vm511, %v510, %v508
    %v514 = vmul.f32 %v505, %v512
    %v515 = vmul.f32 %v506, %v513
    %v516 = vadd.f32 %v490, %v514
    %v517 = vadd.f32 %v491, %v515
    %v518 = vld [vmem:[%s246] sm:$0xff]
    %v519 = vld [vmem:[%s246 + $0x8] sm:$0xff]
    %v520 = vmul.f32 %v518, %v314
    %v521 = vmul.f32 %v519, %v315
    %522 = vrot.lane.b32.xlu0 %v77, 114
    %v523 = vpop.permute.xlu0 %522
    %524 = vrot.lane.b32.xlu0 %v78, 114
    %v525 = vpop.permute.xlu0 %524
    %vm526 = vcmp.lt.s32.totalorder %v323, 114
    %v527 = vsel %vm526, %v523, %v525
    %v528 = vsel %vm526, %v525, %v523
    %v529 = vmul.f32 %v520, %v527
    %v530 = vmul.f32 %v521, %v528
    %v531 = vadd.f32 %v503, %v529
    %v532 = vadd.f32 %v504, %v530
    %v533 = vmul.f32 %v518, %v331
    %v534 = vmul.f32 %v519, %v332
    %535 = vrot.lane.b32.xlu0 %v77, 113
    %v536 = vpop.permute.xlu0 %535
    %537 = vrot.lane.b32.xlu0 %v78, 113
    %v538 = vpop.permute.xlu0 %537
    %vm539 = vcmp.lt.s32.totalorder %v323, 113
    %v540 = vsel %vm539, %v536, %v538
    %v541 = vsel %vm539, %v538, %v536
    %v542 = vmul.f32 %v533, %v540
    %v543 = vmul.f32 %v534, %v541
    %v544 = vadd.f32 %v516, %v542
    %v545 = vadd.f32 %v517, %v543
    %v546 = vmul.f32 %v518, %v346
    %v547 = vmul.f32 %v519, %v347
    %548 = vrot.lane.b32.xlu0 %v77, 112
    %v549 = vpop.permute.xlu0 %548
    %550 = vrot.lane.b32.xlu0 %v78, 112
    %v551 = vpop.permute.xlu0 %550
    %vm552 = vcmp.lt.s32.totalorder %v323, 112
    %v553 = vsel %vm552, %v549, %v551
    %v554 = vsel %vm552, %v551, %v549
    %v555 = vmul.f32 %v546, %v553
    %v556 = vmul.f32 %v547, %v554
    %v557 = vadd.f32 %v531, %v555
    %v558 = vadd.f32 %v532, %v556
    %v559 = vmul.f32 %v518, %v361
    %v560 = vmul.f32 %v519, %v362
    %561 = vrot.lane.b32.xlu0 %v77, 111
    %v562 = vpop.permute.xlu0 %561
    %563 = vrot.lane.b32.xlu0 %v78, 111
    %v564 = vpop.permute.xlu0 %563
    %vm565 = vcmp.lt.s32.totalorder %v323, 111
    %v566 = vsel %vm565, %v562, %v564
    %v567 = vsel %vm565, %v564, %v562
    %v568 = vmul.f32 %v559, %v566
    %v569 = vmul.f32 %v560, %v567
    %v570 = vadd.f32 %v544, %v568
    %v571 = vadd.f32 %v545, %v569
    %v572 = vmul.f32 %v518, %v376
    %v573 = vmul.f32 %v519, %v377
    %574 = vrot.lane.b32.xlu0 %v77, 110
    %v575 = vpop.permute.xlu0 %574
    %576 = vrot.lane.b32.xlu0 %v78, 110
    %v577 = vpop.permute.xlu0 %576
    %vm578 = vcmp.lt.s32.totalorder %v323, 110
    %v579 = vsel %vm578, %v575, %v577
    %v580 = vsel %vm578, %v577, %v575
    %v581 = vmul.f32 %v572, %v579
    %v582 = vmul.f32 %v573, %v580
    %v583 = vadd.f32 %v557, %v581
    %v584 = vadd.f32 %v558, %v582
    %v585 = vld [vmem:[%s288] sm:$0xff]
    %v586 = vld [vmem:[%s288 + $0x8] sm:$0xff]
    %v587 = vmul.f32 %v585, %v314
    %v588 = vmul.f32 %v586, %v315
    %589 = vrot.lane.b32.xlu0 %v77, 98
    %v590 = vpop.permute.xlu0 %589
    %591 = vrot.lane.b32.xlu0 %v78, 98
    %v592 = vpop.permute.xlu0 %591
    %vm593 = vcmp.lt.s32.totalorder %v323, 98
    %v594 = vsel %vm593, %v590, %v592
    %v595 = vsel %vm593, %v592, %v590
    %v596 = vmul.f32 %v587, %v594
    %v597 = vmul.f32 %v588, %v595
    %v598 = vadd.f32 %v570, %v596
    %v599 = vadd.f32 %v571, %v597
    %v600 = vmul.f32 %v585, %v331
    %v601 = vmul.f32 %v586, %v332
    %602 = vrot.lane.b32.xlu0 %v77, 97
    %v603 = vpop.permute.xlu0 %602
    %604 = vrot.lane.b32.xlu0 %v78, 97
    %v605 = vpop.permute.xlu0 %604
    %vm606 = vcmp.lt.s32.totalorder %v323, 97
    %v607 = vsel %vm606, %v603, %v605
    %v608 = vsel %vm606, %v605, %v603
    %v609 = vmul.f32 %v600, %v607
    %v610 = vmul.f32 %v601, %v608
    %v611 = vadd.f32 %v583, %v609
    %v612 = vadd.f32 %v584, %v610
    %v613 = vmul.f32 %v585, %v346
    %v614 = vmul.f32 %v586, %v347
    %615 = vrot.lane.b32.xlu0 %v77, 96
    %v616 = vpop.permute.xlu0 %615
    %617 = vrot.lane.b32.xlu0 %v78, 96
    %v618 = vpop.permute.xlu0 %617
    %vm619 = vcmp.lt.s32.totalorder %v323, 96
    %v620 = vsel %vm619, %v616, %v618
    %v621 = vsel %vm619, %v618, %v616
    %v622 = vmul.f32 %v613, %v620
    %v623 = vmul.f32 %v614, %v621
    %v624 = vadd.f32 %v598, %v622
    %v625 = vadd.f32 %v599, %v623
    %v626 = vmul.f32 %v585, %v361
    %v627 = vmul.f32 %v586, %v362
    %628 = vrot.lane.b32.xlu0 %v77, 95
    %v629 = vpop.permute.xlu0 %628
    %630 = vrot.lane.b32.xlu0 %v78, 95
    %v631 = vpop.permute.xlu0 %630
    %vm632 = vcmp.lt.s32.totalorder %v323, 95
    %v633 = vsel %vm632, %v629, %v631
    %v634 = vsel %vm632, %v631, %v629
    %v635 = vmul.f32 %v626, %v633
    %v636 = vmul.f32 %v627, %v634
    %v637 = vadd.f32 %v611, %v635
    %v638 = vadd.f32 %v612, %v636
    %v639 = vmul.f32 %v585, %v376
    %v640 = vmul.f32 %v586, %v377
    %641 = vrot.lane.b32.xlu0 %v77, 94
    %v642 = vpop.permute.xlu0 %641
    %643 = vrot.lane.b32.xlu0 %v78, 94
    %v644 = vpop.permute.xlu0 %643
    %vm645 = vcmp.lt.s32.totalorder %v323, 94
    %v646 = vsel %vm645, %v642, %v644
    %v647 = vsel %vm645, %v644, %v642
    %v648 = vmul.f32 %v639, %v646
    %v649 = vmul.f32 %v640, %v647
    %v650 = vadd.f32 %v624, %v648
    %v651 = vadd.f32 %v625, %v649
    %v652 = vadd.f32 %v650, %v637
    %v653 = vadd.f32 %v651, %v638
    %654 = vst [vmem:[#allocation13] sm:$0xff] %v652
    %655 = vst [vmem:[#allocation13 + $0x8] sm:$0xff] %v653
    // Predicated region
    $region42: #{tpu_custom_call.1} parent=1 // pred_check
      _
    $region43: #{tpu_custom_call.1} parent=1 // pred_check_branch
      %657 = sbr.rel (0) target = $region45
    $region44: #{tpu_custom_call.1} parent=1 // pred_region
      %s659 = ssub.s32 256, 256
      %660 = vsyncadd [#allocation7], %s659
      %s662 = sshll.u32 [#allocation13], 4
      %s663 = int_to_ptr.vmem [resolvable:$true] %s662
      %665 = dma.vmem_to_hbm [thread:$0]  %s663, 256, %s6, [#allocation7]
    $region45: #{tpu_custom_call.1} parent=1 // pred_fallthru
      _
    // Predicated region
    $region46: #{tpu_custom_call.1} parent=1 // pred_check
      _
    $region47: #{tpu_custom_call.1} parent=1 // pred_check_branch
      %667 = sbr.rel (0) target = $region49
    $region48: #{tpu_custom_call.1} parent=1 // pred_region
      %668 = dma.done [#allocation7], 256
    $region49: #{tpu_custom_call.1} parent=1 // pred_fallthru
      _
    %669 = vsyncpa [#allocation6], 1
    %670 = vsyncpa [#allocation9], 1
    %671 = vsyncpa [#allocation12], 1
    %672 = vsyncpa [#allocation7], 1

</llo_original>
